<compile_context>
chip_gen: v6e
topology: v6e:2x2x1
jax: 0.10.0
libtpu: 0.0.40
codegen_flags: <defaults>
</compile_context>

<pallas_src>
import functools
import math

import jax
import jax.numpy as jnp
from jax.experimental import pallas as pl
from jax.experimental.pallas import tpu as pltpu

DTYPE = jnp.bfloat16      # weights & inter-kernel activations
ACC = jnp.float32         # MXU accumulation / LayerNorm / softmax statistics
LN_EPS = 1e-12


# --------------------------- tiling / VMEM policy ---------------------------

_TILE_CAP = None


def _tile_cap():
    """Row-tile cap per TPU generation."""
    global _TILE_CAP
    if _TILE_CAP is None:
        cap = 128
        try:
            kind = jax.devices()[0].device_kind.lower()
            if "v6" in kind or "trillium" in kind:
                cap = 512   # 128 MiB VMEM, single TC: big tiles amortize step overhead
            # v5e: 128x128 MXU + 16 MiB default scoped VMEM -> 128.
            # v7x: 2 TCs (megacore) -> keep >=2-4 grid steps per core -> 128.
        except Exception:
            cap = 128
        _TILE_CAP = cap
    return _TILE_CAP


def _row_tile(m):
    """Largest row tile <= cap (multiple of 8) evenly dividing m; else full m."""
    cap = _tile_cap()
    for t in (512, 256, 128, 64, 32, 16, 8):
        if t <= cap and m >= t and m % t == 0:
            return t
    return m


def _vmem_budget(const_bytes, act_bytes, scratch_bytes):
    """Scoped-VMEM budget from tile math.

    const_bytes   : single-buffered (Buffered(1)) weights / biases / gammas
    act_bytes     : per-step activation tiles (pipeline double-buffers these)
    scratch_bytes : f32 intermediates materialized inside the kernel body
    """
    total = const_bytes + 2 * act_bytes + scratch_bytes
    total = 2 * total + (4 << 20)                 # 2x safety factor + 4 MiB margin
    return max(min(total, 64 << 20), 32 << 20)    # fits every generation's VMEM


def _params(vmem_bytes):
    return pltpu.CompilerParams(dimension_semantics=("parallel",),
                                vmem_limit_bytes=int(vmem_bytes))


def _const(shape):
    """BlockSpec for a block that is identical every grid step: single-buffered."""
    nd = len(shape)
    return pl.BlockSpec(shape, lambda *_: (0,) * nd, pipeline_mode=pl.Buffered(1))


_VMEM = pl.BlockSpec(memory_space=pltpu.MemorySpace.VMEM)
_SMEM = pl.BlockSpec(memory_space=pltpu.MemorySpace.SMEM)


# ----------------------------- Pallas kernels ------------------------------

def _qkv_kernel(x_ref, w_ref, b_ref, q_ref, kT_ref, v_ref, *, hidden, scale):
    """Fused QKV projection.

    Writes lane-dense slabs: Q (tm, H) with 1/sqrt(dh) folded in, K^T (H, tm)
    (transposed once in the producer so attention never transposes K), V (tm, H).
    """
    y = jnp.dot(x_ref[...], w_ref[...], preferred_element_type=ACC) + b_ref[...]
    q_ref[...] = (y[:, :hidden] * scale).astype(q_ref.dtype)
    kT_ref[...] = jnp.transpose(y[:, hidden:2 * hidden]).astype(kT_ref.dtype)
    v_ref[...] = y[:, 2 * hidden:].astype(v_ref.dtype)


def _attention_kernel(q_ref, kT_ref, v_ref, o_ref, *, num_heads, head_dim):
    """All heads for one query row tile.

    Blocks: q (tq, H), kT (H, S), v (S, H) -> ctx (tq, H).  Scores are (tq, S)
    f32 per head (sequential over heads), so VMEM is O(tq*S), not O(S*S).
    """
    q = q_ref[...]          # scale already folded into q by the producer
    kT = kT_ref[...]
    v = v_ref[...]
    ctx_heads = []
    for h in range(num_heads):                                  # static, unrolled
        lo = h * head_dim
        s = jnp.dot(q[:, lo:lo + head_dim], kT[lo:lo + head_dim, :],
                    preferred_element_type=ACC)                 # (tq, S)
        m = jnp.max(s, axis=-1, keepdims=True)
        p = jnp.exp(s - m)
        denom = jnp.sum(p, axis=-1, keepdims=True)
        ctx = jnp.dot(p.astype(v.dtype), v[:, lo:lo + head_dim],
                      preferred_element_type=ACC)               # (tq, dh)
        ctx_heads.append(ctx * pl.reciprocal(denom, approx=True))   # EUP, not VALU
    # One lane-dense (tq, H) store instead of per-head 64-wide masked stores.
    o_ref[...] = jnp.concatenate(ctx_heads, axis=-1).astype(o_ref.dtype)


def _linear_kernel(x_ref, w_ref, b_ref, o_ref, *, activation):
    y = jnp.dot(x_ref[...], w_ref[...], preferred_element_type=ACC) + b_ref[...]
    if activation == "gelu":
        y = jax.nn.gelu(y, approximate=True)
    o_ref[...] = y.astype(o_ref.dtype)


def _linear_res_ln_kernel(x_ref, w_ref, b_ref, res_ref, g_ref, beta_ref, o_ref):
    """Matmul (full-K contraction) + bias + residual-add + LayerNorm (fused).

    Used both for the attention output projection and for FFN2.
    """
    y = jnp.dot(x_ref[...], w_ref[...], preferred_element_type=ACC) + b_ref[...]
    y = y + res_ref[...].astype(ACC)
    mu = jnp.mean(y, axis=-1, keepdims=True)
    var = jnp.mean(jnp.square(y - mu), axis=-1, keepdims=True)
    inv = jax.lax.rsqrt(var + LN_EPS)
    o_ref[...] = ((y - mu) * inv * g_ref[...] + beta_ref[...]).astype(o_ref.dtype)


def _embed_ln_kernel(wd_ref, pos_ref, tok_ref, g_ref, beta_ref, o_ref):
    x = wd_ref[...].astype(ACC) + pos_ref[...].astype(ACC) + tok_ref[...].astype(ACC)
    mu = jnp.mean(x, axis=-1, keepdims=True)
    var = jnp.mean(jnp.square(x - mu), axis=-1, keepdims=True)
    inv = jax.lax.rsqrt(var + LN_EPS)
    o_ref[...] = ((x - mu) * inv * g_ref[...] + beta_ref[...]).astype(o_ref.dtype)


def _head_kernel(feat_ref, w_ref, b_ref, y_ref, logits_ref, loss_ref):
    """fc + CrossEntropy(ignore_index=-1, reduction='mean')."""
    logits = jnp.dot(feat_ref[...], w_ref[...], preferred_element_type=ACC) + b_ref[...]
    logits_ref[...] = logits.astype(logits_ref.dtype)

    y = y_ref[...]                                             # (N, 1) int32
    m = jnp.max(logits, axis=-1, keepdims=True)
    z = logits - m
    lse = jnp.log(jnp.sum(jnp.exp(z), axis=-1, keepdims=True))
    logp = z - lse                                             # (N, C)
    cls_ids = jax.lax.broadcasted_iota(jnp.int32, logits.shape, 1)
    onehot = (cls_ids == y).astype(ACC)                        # label -1 matches nothing
    per_ex = -jnp.sum(onehot * logp, axis=-1, keepdims=True)   # (N, 1)
    valid = (y != -1).astype(ACC)
    # NOTE: an all-ignored batch yields 0/0 = NaN, matching torch CrossEntropyLoss.
    loss_ref[0, 0] = jnp.sum(per_ex * valid) / jnp.sum(valid)


# ----------------------------- Pallas wrappers ------------------------------

def pallas_qkv(x, w, b, num_heads):
    s, hid = x.shape
    dh = hid // num_heads
    tm = _row_tile(s)
    scale = 1.0 / math.sqrt(dh)
    vmem = _vmem_budget(
        const_bytes=hid * 3 * hid * 2 + 3 * hid * 2,
        act_bytes=tm * hid * 2 + 3 * tm * hid * 2,
        scratch_bytes=tm * 3 * hid * 4 + tm * hid * 4)
    sh_sH = jax.ShapeDtypeStruct((s, hid), DTYPE)
    sh_Hs = jax.ShapeDtypeStruct((hid, s), DTYPE)
    return pl.pallas_call(
        functools.partial(_qkv_kernel, hidden=hid, scale=scale),
        grid=(s // tm,),
        out_shape=(sh_sH, sh_Hs, sh_sH),
        in_specs=[pl.BlockSpec((tm, hid), lambda i: (i, 0)),
                  _const((hid, 3 * hid)),
                  _const((1, 3 * hid))],
        out_specs=(pl.BlockSpec((tm, hid), lambda i: (i, 0)),
                   pl.BlockSpec((hid, tm), lambda i: (0, i)),
                   pl.BlockSpec((tm, hid), lambda i: (i, 0))),
        compiler_params=_params(vmem),
    )(x, w, b)


def pallas_attention(q, kT, v, num_heads):
    s, hid = q.shape
    dh = hid // num_heads
    tq = _row_tile(s)
    vmem = _vmem_budget(
        const_bytes=2 * s * hid * 2,                    # kT + v slabs (revisited)
        act_bytes=2 * tq * hid * 2,                     # q tile + ctx tile
        scratch_bytes=tq * s * 4 + tq * hid * 4)        # per-head scores + ctx concat
    return pl.pallas_call(
        functools.partial(_attention_kernel, num_heads=num_heads, head_dim=dh),
        grid=(s // tq,),
        out_shape=jax.ShapeDtypeStruct((s, hid), DTYPE),
        in_specs=[pl.BlockSpec((tq, hid), lambda i: (i, 0)),
                  _const((hid, s)),
                  _const((s, hid))],
        out_specs=pl.BlockSpec((tq, hid), lambda i: (i, 0)),
        compiler_params=_params(vmem),
    )(q, kT, v)


def pallas_linear(x, w, b, activation=None):
    m, kdim = x.shape
    n = w.shape[1]
    tm = _row_tile(m)
    vmem = _vmem_budget(
        const_bytes=kdim * n * 2 + n * 2,
        act_bytes=tm * kdim * 2 + tm * n * 2,
        scratch_bytes=tm * n * 4)
    return pl.pallas_call(
        functools.partial(_linear_kernel, activation=activation),
        grid=(m // tm,),
        out_shape=jax.ShapeDtypeStruct((m, n), DTYPE),
        in_specs=[pl.BlockSpec((tm, kdim), lambda i: (i, 0)),
                  _const((kdim, n)),
                  _const((1, n))],
        out_specs=pl.BlockSpec((tm, n), lambda i: (i, 0)),
        compiler_params=_params(vmem),
    )(x, w, b)


def pallas_linear_res_ln(x, w, b, residual, gamma, beta):
    m, kdim = x.shape
    n = w.shape[1]
    tm = _row_tile(m)
    vmem = _vmem_budget(
        const_bytes=kdim * n * 2 + 3 * n * 2,
        act_bytes=tm * kdim * 2 + 2 * tm * n * 2,
        scratch_bytes=tm * n * 4)
    return pl.pallas_call(
        _linear_res_ln_kernel,
        grid=(m // tm,),
        out_shape=jax.ShapeDtypeStruct((m, n), DTYPE),
        in_specs=[pl.BlockSpec((tm, kdim), lambda i: (i, 0)),
                  _const((kdim, n)),
                  _const((1, n)),
                  pl.BlockSpec((tm, n), lambda i: (i, 0)),
                  _const((1, n)),
                  _const((1, n))],
        out_specs=pl.BlockSpec((tm, n), lambda i: (i, 0)),
        compiler_params=_params(vmem),
    )(x, w, b, residual, gamma, beta)


def pallas_embed_ln(word, pos, tok, gamma, beta):
    s, hid = word.shape
    return pl.pallas_call(
        _embed_ln_kernel,
        out_shape=jax.ShapeDtypeStruct((s, hid), DTYPE),
        in_specs=[_VMEM] * 5,
        out_specs=_VMEM,
    )(word, pos, tok, gamma, beta)


def pallas_head(feat, w, b, labels):
    n = feat.shape[0]
    c = w.shape[1]
    logits, loss = pl.pallas_call(
        _head_kernel,
        out_shape=(jax.ShapeDtypeStruct((n, c), jnp.float32),
                   jax.ShapeDtypeStruct((1, 1), jnp.float32)),
        in_specs=[_VMEM, _VMEM, _VMEM, _VMEM],
        out_specs=(_VMEM, _SMEM),
    )(feat, w, b, labels.reshape(n, 1).astype(jnp.int32))
    return logits, loss[0, 0]


# ----------------------------- Model (glue) ---------------------------------

def bert_layer(x, p, num_heads):
    q, kT, v = pallas_qkv(x, p["wqkv"], p["bqkv"], num_heads)   # (S,H),(H,S),(S,H)
    ctx = pallas_attention(q, kT, v, num_heads)                 # (S,H) lane-dense
    # Attention output projection: single full-H contraction + residual + LN.
    x = pallas_linear_res_ln(ctx, p["wo"], p["bo"], x, p["ln1_g"], p["ln1_b"])
    hdn = pallas_linear(x, p["w1"], p["b1"], activation="gelu")
    x = pallas_linear_res_ln(hdn, p["w2"], p["b2"], x, p["ln2_g"], p["ln2_b"])
    return x


def bert_encoder(params, input_ids, num_heads):
    # input_ids: (1, S) int32
    s = input_ids.shape[1]
    word = jnp.take(params["word_emb"], input_ids[0], axis=0)   # (S, H)
    pos = params["pos_emb"][:s]                                 # (S, H)
    tok = params["type_emb"][0:1]                               # (1, H), token_type 0
    x = pallas_embed_ln(word, pos, tok, params["emb_ln_g"], params["emb_ln_b"])
    for layer in params["layers"]:
        x = bert_layer(x, layer, num_heads)
    return x                                                    # (S, H)


def bert_re_forward(params, data_x, data_e1, data_e2, data_y, *, num_heads):
    """Mirrors BertRE.forward: returns (logits, loss)."""
    enc = bert_encoder(params["bert"], data_x, num_heads)             # (S, H)
    # EndpointSpanExtractor(combination='x'): embedding at the span-start index.
    enc1 = jnp.take(enc, data_e1[:, 0], axis=0)                       # (N, H)
    enc2 = jnp.take(enc, data_e2[:, 0], axis=0)                       # (N, H)
    feat = jnp.concatenate([enc1, enc2], axis=-1)                     # (N, 2H)
    logits, loss = pallas_head(feat, params["fc_w"], params["fc_b"], data_y)
    return logits, loss


# ----------------------------- Parameter init -------------------------------

def init_params(key, vocab, max_pos, type_vocab, hidden, ffn, n_layers, y_num):
    keys = iter(jax.random.split(key, 8 + 8 * n_layers))

    def nrm(shape, scale=0.02):
        w = scale * jax.random.normal(next(keys), shape, dtype=jnp.float32)
        return w.astype(DTYPE)

    ones = lambda n: jnp.ones((1, n), jnp.float32)
    zeros = lambda n: jnp.zeros((1, n), jnp.float32)

    bert = {
        "word_emb": nrm((vocab, hidden)),
        "pos_emb": nrm((max_pos, hidden)),
        "type_emb": nrm((type_vocab, hidden)),
        "emb_ln_g": ones(hidden),
        "emb_ln_b": zeros(hidden),
        "layers": [],
    }
    for _ in range(n_layers):
        bert["layers"].append({
            "wqkv": nrm((hidden, 3 * hidden)), "bqkv": zeros(3 * hidden),
            "wo": nrm((hidden, hidden)), "bo": zeros(hidden),
            "ln1_g": ones(hidden), "ln1_b": zeros(hidden),
            "w1": nrm((hidden, ffn)), "b1": zeros(ffn),
            "w2": nrm((ffn, hidden)), "b2": zeros(hidden),
            "ln2_g": ones(hidden), "ln2_b": zeros(hidden),
        })
    return {
        "bert": bert,
        "fc_w": nrm((2 * hidden, y_num)),
        "fc_b": zeros(y_num),
    }


# ----------------------------------- main ------------------------------------

if __name__ == "__main__":
    S, H, NH, FFN, LAYERS = 16, 32, 2, 64, 2
    VOCAB, MAX_POS, TYPE_VOCAB = 100, 64, 2
    Y_NUM, N_SPANS = 4, 3

    key = jax.random.PRNGKey(0)
    k_params, k_x = jax.random.split(key, 2)
    params = init_params(k_params, VOCAB, MAX_POS, TYPE_VOCAB, H, FFN, LAYERS, Y_NUM)

    data_x = jax.random.randint(k_x, (1, S), 0, VOCAB, dtype=jnp.int32)
    data_e1 = jnp.array([[1, 2], [4, 6], [8, 8]], dtype=jnp.int32)    # (N, 2) spans
    data_e2 = jnp.array([[3, 5], [7, 9], [10, 12]], dtype=jnp.int32)  # (N, 2) spans
    data_y = jnp.array([0, 2, -1], dtype=jnp.int32)                   # -1 = ignore

    fwd = jax.jit(functools.partial(bert_re_forward, num_heads=NH))
    logits, loss = fwd(params, data_x, data_e1, data_e2, data_y)
    jax.block_until_ready((logits, loss))

    assert logits.shape == (N_SPANS, Y_NUM)
    assert loss.shape == ()
    print("KERNEL_OK")
</pallas_src>

<mosaic_0001>
module attributes {stable_mosaic.version = 11 : i64} {
  func.func @_embed_ln_kernel(%arg0: memref<16x32xbf16, #tpu.memory_space<vmem>>, %arg1: memref<16x32xbf16, #tpu.memory_space<vmem>>, %arg2: memref<1x32xbf16, #tpu.memory_space<vmem>>, %arg3: memref<1x32xf32, #tpu.memory_space<vmem>>, %arg4: memref<1x32xf32, #tpu.memory_space<vmem>>, %arg5: memref<16x32xbf16, #tpu.memory_space<vmem>>) attributes {dimension_semantics = [], scalar_prefetch = 0 : i64, scratch_operands = 0 : i64, tpu.core_type = #tpu.core_type<tc>} {
    %c0 = arith.constant 0 : index
    %c0_0 = arith.constant 0 : index
    %0 = vector.load %arg0[%c0, %c0_0] : memref<16x32xbf16, #tpu.memory_space<vmem>>, vector<16x32xbf16>
    %1 = arith.extf %0 : vector<16x32xbf16> to vector<16x32xf32>
    %c0_1 = arith.constant 0 : index
    %c0_2 = arith.constant 0 : index
    %2 = vector.load %arg1[%c0_1, %c0_2] : memref<16x32xbf16, #tpu.memory_space<vmem>>, vector<16x32xbf16>
    %3 = arith.extf %2 : vector<16x32xbf16> to vector<16x32xf32>
    %4 = arith.addf %1, %3 : vector<16x32xf32>
    %c0_3 = arith.constant 0 : index
    %c0_4 = arith.constant 0 : index
    %5 = vector.load %arg2[%c0_3, %c0_4] : memref<1x32xbf16, #tpu.memory_space<vmem>>, vector<1x32xbf16>
    %6 = arith.extf %5 : vector<1x32xbf16> to vector<1x32xf32>
    %7 = vector.broadcast %6 : vector<1x32xf32> to vector<16x32xf32>
    %8 = arith.addf %4, %7 : vector<16x32xf32>
    %cst = arith.constant dense<0.000000e+00> : vector<16xf32>
    %9 = vector.multi_reduction <add>, %8, %cst [1] : vector<16x32xf32> to vector<16xf32>
    %10 = vector.shape_cast %9 : vector<16xf32> to vector<16x1xf32>
    %cst_5 = arith.constant 3.200000e+01 : f32
    %11 = vector.broadcast %cst_5 : f32 to vector<16x1xf32>
    %12 = arith.divf %10, %11 : vector<16x1xf32>
    %13 = vector.broadcast %12 : vector<16x1xf32> to vector<16x32xf32>
    %14 = arith.subf %8, %13 : vector<16x32xf32>
    %15 = arith.mulf %14, %14 : vector<16x32xf32>
    %cst_6 = arith.constant dense<0.000000e+00> : vector<16xf32>
    %16 = vector.multi_reduction <add>, %15, %cst_6 [1] : vector<16x32xf32> to vector<16xf32>
    %17 = vector.shape_cast %16 : vector<16xf32> to vector<16x1xf32>
    %cst_7 = arith.constant 3.200000e+01 : f32
    %18 = vector.broadcast %cst_7 : f32 to vector<16x1xf32>
    %19 = arith.divf %17, %18 : vector<16x1xf32>
    %cst_8 = arith.constant 9.99999996E-13 : f32
    %20 = vector.broadcast %cst_8 : f32 to vector<16x1xf32>
    %21 = arith.addf %19, %20 : vector<16x1xf32>
    %22 = math.rsqrt %21 : vector<16x1xf32>
    %23 = vector.broadcast %12 : vector<16x1xf32> to vector<16x32xf32>
    %24 = arith.subf %8, %23 : vector<16x32xf32>
    %25 = vector.broadcast %22 : vector<16x1xf32> to vector<16x32xf32>
    %26 = arith.mulf %24, %25 : vector<16x32xf32>
    %c0_9 = arith.constant 0 : index
    %c0_10 = arith.constant 0 : index
    %27 = vector.load %arg3[%c0_9, %c0_10] : memref<1x32xf32, #tpu.memory_space<vmem>>, vector<1x32xf32>
    %28 = vector.broadcast %27 : vector<1x32xf32> to vector<16x32xf32>
    %29 = arith.mulf %26, %28 : vector<16x32xf32>
    %c0_11 = arith.constant 0 : index
    %c0_12 = arith.constant 0 : index
    %30 = vector.load %arg4[%c0_11, %c0_12] : memref<1x32xf32, #tpu.memory_space<vmem>>, vector<1x32xf32>
    %31 = vector.broadcast %30 : vector<1x32xf32> to vector<16x32xf32>
    %32 = arith.addf %29, %31 : vector<16x32xf32>
    %33 = arith.truncf %32 : vector<16x32xf32> to vector<16x32xbf16>
    %c0_13 = arith.constant 0 : index
    %c0_14 = arith.constant 0 : index
    %34 = vector.load %arg5[%c0_13, %c0_14] : memref<16x32xbf16, #tpu.memory_space<vmem>>, vector<16x32xbf16>
    tpu.vector_store %arg5[%c0_13, %c0_14], %33 {strides = array<i32>} : memref<16x32xbf16, #tpu.memory_space<vmem>>, vector<16x32xbf16>,
    return
  }
}

module attributes {stable_mosaic.version = 11 : i64} {
  func.func @_qkv_kernel(%arg0: i32, %arg1: memref<16x32xbf16, #tpu.memory_space<vmem>>, %arg2: memref<32x96xbf16, #tpu.memory_space<vmem>>, %arg3: memref<1x96xf32, #tpu.memory_space<vmem>>, %arg4: memref<16x32xbf16, #tpu.memory_space<vmem>>, %arg5: memref<32x16xbf16, #tpu.memory_space<vmem>>, %arg6: memref<16x32xbf16, #tpu.memory_space<vmem>>) attributes {dimension_semantics = [#tpu.dimension_semantics<parallel>], iteration_bounds = array<i64: 1>, scalar_prefetch = 0 : i64, scratch_operands = 0 : i64, tpu.core_type = #tpu.core_type<tc>, window_params = [{transform_indices = @transform_0, window_bounds = array<i64: 16, 32>}, {pipeline_mode = #tpu.pipeline_mode<synchronous>, transform_indices = @transform_1, window_bounds = array<i64: 32, 96>}, {pipeline_mode = #tpu.pipeline_mode<synchronous>, transform_indices = @transform_2, window_bounds = array<i64: 1, 96>}, {transform_indices = @transform_3, window_bounds = array<i64: 16, 32>}, {transform_indices = @transform_4, window_bounds = array<i64: 32, 16>}, {transform_indices = @transform_5, window_bounds = array<i64: 16, 32>}]} {
    %c0 = arith.constant 0 : index
    %c0_0 = arith.constant 0 : index
    %0 = vector.load %arg1[%c0, %c0_0] : memref<16x32xbf16, #tpu.memory_space<vmem>>, vector<16x32xbf16>
    %c0_1 = arith.constant 0 : index
    %c0_2 = arith.constant 0 : index
    %1 = vector.load %arg2[%c0_1, %c0_2] : memref<32x96xbf16, #tpu.memory_space<vmem>>, vector<32x96xbf16>
    %cst = arith.constant dense<0.000000e+00> : vector<16x96xf32>
    %2 = tpu.matmul %0, %1, %cst {dimension_numbers = #tpu.dot_dimension_numbers<[1], [0], [0], [1], [0, 0, 1, 1], [], []>} : vector<16x32xbf16>, vector<32x96xbf16>, vector<16x96xf32> -> vector<16x96xf32>
    %c0_3 = arith.constant 0 : index
    %c0_4 = arith.constant 0 : index
    %3 = vector.load %arg3[%c0_3, %c0_4] : memref<1x96xf32, #tpu.memory_space<vmem>>, vector<1x96xf32>
    %4 = vector.broadcast %3 : vector<1x96xf32> to vector<16x96xf32>
    %5 = arith.addf %2, %4 : vector<16x96xf32>
    %6 = vector.extract_strided_slice %5 {offsets = [0, 0], sizes = [16, 32], strides = [1, 1]} : vector<16x96xf32> to vector<16x32xf32>
    %cst_5 = arith.constant 2.500000e-01 : f32
    %7 = vector.broadcast %cst_5 : f32 to vector<16x32xf32>
    %8 = arith.mulf %6, %7 : vector<16x32xf32>
    %9 = arith.truncf %8 : vector<16x32xf32> to vector<16x32xbf16>
    %c0_6 = arith.constant 0 : index
    %c0_7 = arith.constant 0 : index
    %10 = vector.load %arg4[%c0_6, %c0_7] : memref<16x32xbf16, #tpu.memory_space<vmem>>, vector<16x32xbf16>
    tpu.vector_store %arg4[%c0_6, %c0_7], %9 {strides = array<i32>} : memref<16x32xbf16, #tpu.memory_space<vmem>>, vector<16x32xbf16>,
    %11 = vector.extract_strided_slice %5 {offsets = [0, 32], sizes = [16, 32], strides = [1, 1]} : vector<16x96xf32> to vector<16x32xf32>
    %12 = tpu.transpose %11, [1, 0] : vector<16x32xf32> -> vector<32x16xf32>
    %13 = arith.truncf %12 : vector<32x16xf32> to vector<32x16xbf16>
    %c0_8 = arith.constant 0 : index
    %c0_9 = arith.constant 0 : index
    %14 = vector.load %arg5[%c0_8, %c0_9] : memref<32x16xbf16, #tpu.memory_space<vmem>>, vector<32x16xbf16>
    tpu.vector_store %arg5[%c0_8, %c0_9], %13 {strides = array<i32>} : memref<32x16xbf16, #tpu.memory_space<vmem>>, vector<32x16xbf16>,
    %15 = vector.extract_strided_slice %5 {offsets = [0, 64], sizes = [16, 32], strides = [1, 1]} : vector<16x96xf32> to vector<16x32xf32>
    %16 = arith.truncf %15 : vector<16x32xf32> to vector<16x32xbf16>
    %c0_10 = arith.constant 0 : index
    %c0_11 = arith.constant 0 : index
    %17 = vector.load %arg6[%c0_10, %c0_11] : memref<16x32xbf16, #tpu.memory_space<vmem>>, vector<16x32xbf16>
    tpu.vector_store %arg6[%c0_10, %c0_11], %16 {strides = array<i32>} : memref<16x32xbf16, #tpu.memory_space<vmem>>, vector<16x32xbf16>,
    return
  }
  func.func @transform_0(%arg0: i32) -> (i32, i32) {
    %c0_i32 = arith.constant 0 : i32
    %c0_i32_0 = arith.constant 0 : i32
    return %arg0, %c0_i32 : i32, i32
  }
  func.func @transform_1(%arg0: i32) -> (i32, i32) {
    %c0_i32 = arith.constant 0 : i32
    %c0_i32_0 = arith.constant 0 : i32
    %c0_i32_1 = arith.constant 0 : i32
    return %c0_i32, %c0_i32_0 : i32, i32
  }
  func.func @transform_2(%arg0: i32) -> (i32, i32) {
    %c0_i32 = arith.constant 0 : i32
    %c0_i32_0 = arith.constant 0 : i32
    %c0_i32_1 = arith.constant 0 : i32
    return %c0_i32, %c0_i32_0 : i32, i32
  }
  func.func @transform_3(%arg0: i32) -> (i32, i32) {
    %c0_i32 = arith.constant 0 : i32
    %c0_i32_0 = arith.constant 0 : i32
    return %arg0, %c0_i32 : i32, i32
  }
  func.func @transform_4(%arg0: i32) -> (i32, i32) {
    %c0_i32 = arith.constant 0 : i32
    %c0_i32_0 = arith.constant 0 : i32
    return %c0_i32, %arg0 : i32, i32
  }
  func.func @transform_5(%arg0: i32) -> (i32, i32) {
    %c0_i32 = arith.constant 0 : i32
    %c0_i32_0 = arith.constant 0 : i32
    return %arg0, %c0_i32 : i32, i32
  }
}

module attributes {stable_mosaic.version = 11 : i64} {
  func.func @_linear_res_ln_kernel(%arg0: i32, %arg1: memref<16x32xbf16, #tpu.memory_space<vmem>>, %arg2: memref<32x32xbf16, #tpu.memory_space<vmem>>, %arg3: memref<1x32xf32, #tpu.memory_space<vmem>>, %arg4: memref<16x32xbf16, #tpu.memory_space<vmem>>, %arg5: memref<1x32xf32, #tpu.memory_space<vmem>>, %arg6: memref<1x32xf32, #tpu.memory_space<vmem>>, %arg7: memref<16x32xbf16, #tpu.memory_space<vmem>>) attributes {dimension_semantics = [#tpu.dimension_semantics<parallel>], iteration_bounds = array<i64: 1>, scalar_prefetch = 0 : i64, scratch_operands = 0 : i64, tpu.core_type = #tpu.core_type<tc>, window_params = [{transform_indices = @transform_0, window_bounds = array<i64: 16, 32>}, {pipeline_mode = #tpu.pipeline_mode<synchronous>, transform_indices = @transform_1, window_bounds = array<i64: 32, 32>}, {pipeline_mode = #tpu.pipeline_mode<synchronous>, transform_indices = @transform_2, window_bounds = array<i64: 1, 32>}, {transform_indices = @transform_3, window_bounds = array<i64: 16, 32>}, {pipeline_mode = #tpu.pipeline_mode<synchronous>, transform_indices = @transform_4, window_bounds = array<i64: 1, 32>}, {pipeline_mode = #tpu.pipeline_mode<synchronous>, transform_indices = @transform_5, window_bounds = array<i64: 1, 32>}, {transform_indices = @transform_6, window_bounds = array<i64: 16, 32>}]} {
    %c0 = arith.constant 0 : index
    %c0_0 = arith.constant 0 : index
    %0 = vector.load %arg1[%c0, %c0_0] : memref<16x32xbf16, #tpu.memory_space<vmem>>, vector<16x32xbf16>
    %c0_1 = arith.constant 0 : index
    %c0_2 = arith.constant 0 : index
    %1 = vector.load %arg2[%c0_1, %c0_2] : memref<32x32xbf16, #tpu.memory_space<vmem>>, vector<32x32xbf16>
    %cst = arith.constant dense<0.000000e+00> : vector<16x32xf32>
    %2 = tpu.matmul %0, %1, %cst {dimension_numbers = #tpu.dot_dimension_numbers<[1], [0], [0], [1], [0, 0, 1, 1], [], []>} : vector<16x32xbf16>, vector<32x32xbf16>, vector<16x32xf32> -> vector<16x32xf32>
    %c0_3 = arith.constant 0 : index
    %c0_4 = arith.constant 0 : index
    %3 = vector.load %arg3[%c0_3, %c0_4] : memref<1x32xf32, #tpu.memory_space<vmem>>, vector<1x32xf32>
    %4 = vector.broadcast %3 : vector<1x32xf32> to vector<16x32xf32>
    %5 = arith.addf %2, %4 : vector<16x32xf32>
    %c0_5 = arith.constant 0 : index
    %c0_6 = arith.constant 0 : index
    %6 = vector.load %arg4[%c0_5, %c0_6] : memref<16x32xbf16, #tpu.memory_space<vmem>>, vector<16x32xbf16>
    %7 = arith.extf %6 : vector<16x32xbf16> to vector<16x32xf32>
    %8 = arith.addf %5, %7 : vector<16x32xf32>
    %cst_7 = arith.constant dense<0.000000e+00> : vector<16xf32>
    %9 = vector.multi_reduction <add>, %8, %cst_7 [1] : vector<16x32xf32> to vector<16xf32>
    %10 = vector.shape_cast %9 : vector<16xf32> to vector<16x1xf32>
    %cst_8 = arith.constant 3.200000e+01 : f32
    %11 = vector.broadcast %cst_8 : f32 to vector<16x1xf32>
    %12 = arith.divf %10, %11 : vector<16x1xf32>
    %13 = vector.broadcast %12 : vector<16x1xf32> to vector<16x32xf32>
    %14 = arith.subf %8, %13 : vector<16x32xf32>
    %15 = arith.mulf %14, %14 : vector<16x32xf32>
    %cst_9 = arith.constant dense<0.000000e+00> : vector<16xf32>
    %16 = vector.multi_reduction <add>, %15, %cst_9 [1] : vector<16x32xf32> to vector<16xf32>
    %17 = vector.shape_cast %16 : vector<16xf32> to vector<16x1xf32>
    %cst_10 = arith.constant 3.200000e+01 : f32
    %18 = vector.broadcast %cst_10 : f32 to vector<16x1xf32>
    %19 = arith.divf %17, %18 : vector<16x1xf32>
    %cst_11 = arith.constant 9.99999996E-13 : f32
    %20 = vector.broadcast %cst_11 : f32 to vector<16x1xf32>
    %21 = arith.addf %19, %20 : vector<16x1xf32>
    %22 = math.rsqrt %21 : vector<16x1xf32>
    %23 = vector.broadcast %12 : vector<16x1xf32> to vector<16x32xf32>
    %24 = arith.subf %8, %23 : vector<16x32xf32>
    %25 = vector.broadcast %22 : vector<16x1xf32> to vector<16x32xf32>
    %26 = arith.mulf %24, %25 : vector<16x32xf32>
    %c0_12 = arith.constant 0 : index
    %c0_13 = arith.constant 0 : index
    %27 = vector.load %arg5[%c0_12, %c0_13] : memref<1x32xf32, #tpu.memory_space<vmem>>, vector<1x32xf32>
    %28 = vector.broadcast %27 : vector<1x32xf32> to vector<16x32xf32>
    %29 = arith.mulf %26, %28 : vector<16x32xf32>
    %c0_14 = arith.constant 0 : index
    %c0_15 = arith.constant 0 : index
    %30 = vector.load %arg6[%c0_14, %c0_15] : memref<1x32xf32, #tpu.memory_space<vmem>>, vector<1x32xf32>
    %31 = vector.broadcast %30 : vector<1x32xf32> to vector<16x32xf32>
    %32 = arith.addf %29, %31 : vector<16x32xf32>
    %33 = arith.truncf %32 : vector<16x32xf32> to vector<16x32xbf16>
    %c0_16 = arith.constant 0 : index
    %c0_17 = arith.constant 0 : index
    %34 = vector.load %arg7[%c0_16, %c0_17] : memref<16x32xbf16, #tpu.memory_space<vmem>>, vector<16x32xbf16>
    tpu.vector_store %arg7[%c0_16, %c0_17], %33 {strides = array<i32>} : memref<16x32xbf16, #tpu.memory_space<vmem>>, vector<16x32xbf16>,
    return
  }
  func.func @transform_0(%arg0: i32) -> (i32, i32) {
    %c0_i32 = arith.constant 0 : i32
    %c0_i32_0 = arith.constant 0 : i32
    return %arg0, %c0_i32 : i32, i32
  }
  func.func @transform_1(%arg0: i32) -> (i32, i32) {
    %c0_i32 = arith.constant 0 : i32
    %c0_i32_0 = arith.constant 0 : i32
    %c0_i32_1 = arith.constant 0 : i32
    return %c0_i32, %c0_i32_0 : i32, i32
  }
  func.func @transform_2(%arg0: i32) -> (i32, i32) {
    %c0_i32 = arith.constant 0 : i32
    %c0_i32_0 = arith.constant 0 : i32
    %c0_i32_1 = arith.constant 0 : i32
    return %c0_i32, %c0_i32_0 : i32, i32
  }
  func.func @transform_3(%arg0: i32) -> (i32, i32) {
    %c0_i32 = arith.constant 0 : i32
    %c0_i32_0 = arith.constant 0 : i32
    return %arg0, %c0_i32 : i32, i32
  }
  func.func @transform_4(%arg0: i32) -> (i32, i32) {
    %c0_i32 = arith.constant 0 : i32
    %c0_i32_0 = arith.constant 0 : i32
    %c0_i32_1 = arith.constant 0 : i32
    return %c0_i32, %c0_i32_0 : i32, i32
  }
  func.func @transform_5(%arg0: i32) -> (i32, i32) {
    %c0_i32 = arith.constant 0 : i32
    %c0_i32_0 = arith.constant 0 : i32
    %c0_i32_1 = arith.constant 0 : i32
    return %c0_i32, %c0_i32_0 : i32, i32
  }
  func.func @transform_6(%arg0: i32) -> (i32, i32) {
    %c0_i32 = arith.constant 0 : i32
    %c0_i32_0 = arith.constant 0 : i32
    return %arg0, %c0_i32 : i32, i32
  }
}

module attributes {stable_mosaic.version = 11 : i64} {
  func.func @_attention_kernel(%arg0: i32, %arg1: memref<16x32xbf16, #tpu.memory_space<vmem>>, %arg2: memref<32x16xbf16, #tpu.memory_space<vmem>>, %arg3: memref<16x32xbf16, #tpu.memory_space<vmem>>, %arg4: memref<16x32xbf16, #tpu.memory_space<vmem>>) attributes {dimension_semantics = [#tpu.dimension_semantics<parallel>], iteration_bounds = array<i64: 1>, scalar_prefetch = 0 : i64, scratch_operands = 0 : i64, tpu.core_type = #tpu.core_type<tc>, window_params = [{transform_indices = @transform_0, window_bounds = array<i64: 16, 32>}, {pipeline_mode = #tpu.pipeline_mode<synchronous>, transform_indices = @transform_1, window_bounds = array<i64: 32, 16>}, {pipeline_mode = #tpu.pipeline_mode<synchronous>, transform_indices = @transform_2, window_bounds = array<i64: 16, 32>}, {transform_indices = @transform_3, window_bounds = array<i64: 16, 32>}]} {
    %c0 = arith.constant 0 : index
    %c0_0 = arith.constant 0 : index
    %0 = vector.load %arg1[%c0, %c0_0] : memref<16x32xbf16, #tpu.memory_space<vmem>>, vector<16x32xbf16>
    %c0_1 = arith.constant 0 : index
    %c0_2 = arith.constant 0 : index
    %1 = vector.load %arg2[%c0_1, %c0_2] : memref<32x16xbf16, #tpu.memory_space<vmem>>, vector<32x16xbf16>
    %c0_3 = arith.constant 0 : index
    %c0_4 = arith.constant 0 : index
    %2 = vector.load %arg3[%c0_3, %c0_4] : memref<16x32xbf16, #tpu.memory_space<vmem>>, vector<16x32xbf16>
    %3 = vector.extract_strided_slice %0 {offsets = [0, 0], sizes = [16, 16], strides = [1, 1]} : vector<16x32xbf16> to vector<16x16xbf16>
    %4 = vector.extract_strided_slice %1 {offsets = [0, 0], sizes = [16, 16], strides = [1, 1]} : vector<32x16xbf16> to vector<16x16xbf16>
    %cst = arith.constant dense<0.000000e+00> : vector<16x16xf32>
    %5 = tpu.matmul %3, %4, %cst {dimension_numbers = #tpu.dot_dimension_numbers<[1], [0], [0], [1], [0, 0, 1, 1], [], []>} : vector<16x16xbf16>, vector<16x16xbf16>, vector<16x16xf32> -> vector<16x16xf32>
    %cst_5 = arith.constant dense<0xFF800000> : vector<16xf32>
    %6 = vector.multi_reduction <maximumf>, %5, %cst_5 [1] : vector<16x16xf32> to vector<16xf32>
    %7 = vector.shape_cast %6 : vector<16xf32> to vector<16x1xf32>
    %8 = vector.broadcast %7 : vector<16x1xf32> to vector<16x16xf32>
    %9 = arith.subf %5, %8 : vector<16x16xf32>
    %10 = math.exp %9 : vector<16x16xf32>
    %cst_6 = arith.constant dense<0.000000e+00> : vector<16xf32>
    %11 = vector.multi_reduction <add>, %10, %cst_6 [1] : vector<16x16xf32> to vector<16xf32>
    %12 = vector.shape_cast %11 : vector<16xf32> to vector<16x1xf32>
    %13 = arith.truncf %10 : vector<16x16xf32> to vector<16x16xbf16>
    %14 = vector.extract_strided_slice %2 {offsets = [0, 0], sizes = [16, 16], strides = [1, 1]} : vector<16x32xbf16> to vector<16x16xbf16>
    %cst_7 = arith.constant dense<0.000000e+00> : vector<16x16xf32>
    %15 = tpu.matmul %13, %14, %cst_7 {dimension_numbers = #tpu.dot_dimension_numbers<[1], [0], [0], [1], [0, 0, 1, 1], [], []>} : vector<16x16xbf16>, vector<16x16xbf16>, vector<16x16xf32> -> vector<16x16xf32>
    %16 = tpu.reciprocal %12 {approx = true} : vector<16x1xf32> -> vector<16x1xf32>
    %17 = vector.broadcast %16 : vector<16x1xf32> to vector<16x16xf32>
    %18 = arith.mulf %15, %17 : vector<16x16xf32>
    %19 = vector.extract_strided_slice %0 {offsets = [0, 16], sizes = [16, 16], strides = [1, 1]} : vector<16x32xbf16> to vector<16x16xbf16>
    %20 = vector.extract_strided_slice %1 {offsets = [16, 0], sizes = [16, 16], strides = [1, 1]} : vector<32x16xbf16> to vector<16x16xbf16>
    %cst_8 = arith.constant dense<0.000000e+00> : vector<16x16xf32>
    %21 = tpu.matmul %19, %20, %cst_8 {dimension_numbers = #tpu.dot_dimension_numbers<[1], [0], [0], [1], [0, 0, 1, 1], [], []>} : vector<16x16xbf16>, vector<16x16xbf16>, vector<16x16xf32> -> vector<16x16xf32>
    %cst_9 = arith.constant dense<0xFF800000> : vector<16xf32>
    %22 = vector.multi_reduction <maximumf>, %21, %cst_9 [1] : vector<16x16xf32> to vector<16xf32>
    %23 = vector.shape_cast %22 : vector<16xf32> to vector<16x1xf32>
    %24 = vector.broadcast %23 : vector<16x1xf32> to vector<16x16xf32>
    %25 = arith.subf %21, %24 : vector<16x16xf32>
    %26 = math.exp %25 : vector<16x16xf32>
    %cst_10 = arith.constant dense<0.000000e+00> : vector<16xf32>
    %27 = vector.multi_reduction <add>, %26, %cst_10 [1] : vector<16x16xf32> to vector<16xf32>
    %28 = vector.shape_cast %27 : vector<16xf32> to vector<16x1xf32>
    %29 = arith.truncf %26 : vector<16x16xf32> to vector<16x16xbf16>
    %30 = vector.extract_strided_slice %2 {offsets = [0, 16], sizes = [16, 16], strides = [1, 1]} : vector<16x32xbf16> to vector<16x16xbf16>
    %cst_11 = arith.constant dense<0.000000e+00> : vector<16x16xf32>
    %31 = tpu.matmul %29, %30, %cst_11 {dimension_numbers = #tpu.dot_dimension_numbers<[1], [0], [0], [1], [0, 0, 1, 1], [], []>} : vector<16x16xbf16>, vector<16x16xbf16>, vector<16x16xf32> -> vector<16x16xf32>
    %32 = tpu.reciprocal %28 {approx = true} : vector<16x1xf32> -> vector<16x1xf32>
    %33 = vector.broadcast %32 : vector<16x1xf32> to vector<16x16xf32>
    %34 = arith.mulf %31, %33 : vector<16x16xf32>
    %35 = tpu.concatenate %18, %34 in 1 : vector<16x16xf32>, vector<16x16xf32> -> vector<16x32xf32>
    %36 = arith.truncf %35 : vector<16x32xf32> to vector<16x32xbf16>
    %c0_12 = arith.constant 0 : index
    %c0_13 = arith.constant 0 : index
    %37 = vector.load %arg4[%c0_12, %c0_13] : memref<16x32xbf16, #tpu.memory_space<vmem>>, vector<16x32xbf16>
    tpu.vector_store %arg4[%c0_12, %c0_13], %36 {strides = array<i32>} : memref<16x32xbf16, #tpu.memory_space<vmem>>, vector<16x32xbf16>,
    return
  }
  func.func @transform_0(%arg0: i32) -> (i32, i32) {
    %c0_i32 = arith.constant 0 : i32
    %c0_i32_0 = arith.constant 0 : i32
    return %arg0, %c0_i32 : i32, i32
  }
  func.func @transform_1(%arg0: i32) -> (i32, i32) {
    %c0_i32 = arith.constant 0 : i32
    %c0_i32_0 = arith.constant 0 : i32
    %c0_i32_1 = arith.constant 0 : i32
    return %c0_i32, %c0_i32_0 : i32, i32
  }
  func.func @transform_2(%arg0: i32) -> (i32, i32) {
    %c0_i32 = arith.constant 0 : i32
    %c0_i32_0 = arith.constant 0 : i32
    %c0_i32_1 = arith.constant 0 : i32
    return %c0_i32, %c0_i32_0 : i32, i32
  }
  func.func @transform_3(%arg0: i32) -> (i32, i32) {
    %c0_i32 = arith.constant 0 : i32
    %c0_i32_0 = arith.constant 0 : i32
    return %arg0, %c0_i32 : i32, i32
  }
}

module attributes {stable_mosaic.version = 11 : i64} {
  func.func @_linear_kernel(%arg0: i32, %arg1: memref<16x32xbf16, #tpu.memory_space<vmem>>, %arg2: memref<32x64xbf16, #tpu.memory_space<vmem>>, %arg3: memref<1x64xf32, #tpu.memory_space<vmem>>, %arg4: memref<16x64xbf16, #tpu.memory_space<vmem>>) attributes {dimension_semantics = [#tpu.dimension_semantics<parallel>], iteration_bounds = array<i64: 1>, scalar_prefetch = 0 : i64, scratch_operands = 0 : i64, tpu.core_type = #tpu.core_type<tc>, window_params = [{transform_indices = @transform_0, window_bounds = array<i64: 16, 32>}, {pipeline_mode = #tpu.pipeline_mode<synchronous>, transform_indices = @transform_1, window_bounds = array<i64: 32, 64>}, {pipeline_mode = #tpu.pipeline_mode<synchronous>, transform_indices = @transform_2, window_bounds = array<i64: 1, 64>}, {transform_indices = @transform_3, window_bounds = array<i64: 16, 64>}]} {
    %c0 = arith.constant 0 : index
    %c0_0 = arith.constant 0 : index
    %0 = vector.load %arg1[%c0, %c0_0] : memref<16x32xbf16, #tpu.memory_space<vmem>>, vector<16x32xbf16>
    %c0_1 = arith.constant 0 : index
    %c0_2 = arith.constant 0 : index
    %1 = vector.load %arg2[%c0_1, %c0_2] : memref<32x64xbf16, #tpu.memory_space<vmem>>, vector<32x64xbf16>
    %cst = arith.constant dense<0.000000e+00> : vector<16x64xf32>
    %2 = tpu.matmul %0, %1, %cst {dimension_numbers = #tpu.dot_dimension_numbers<[1], [0], [0], [1], [0, 0, 1, 1], [], []>} : vector<16x32xbf16>, vector<32x64xbf16>, vector<16x64xf32> -> vector<16x64xf32>
    %c0_3 = arith.constant 0 : index
    %c0_4 = arith.constant 0 : index
    %3 = vector.load %arg3[%c0_3, %c0_4] : memref<1x64xf32, #tpu.memory_space<vmem>>, vector<1x64xf32>
    %4 = vector.broadcast %3 : vector<1x64xf32> to vector<16x64xf32>
    %5 = arith.addf %2, %4 : vector<16x64xf32>
    %6 = arith.mulf %5, %5 : vector<16x64xf32>
    %7 = arith.mulf %5, %6 : vector<16x64xf32>
    %cst_5 = arith.constant 4.471500e-02 : f32
    %8 = vector.broadcast %cst_5 : f32 to vector<16x64xf32>
    %9 = arith.mulf %8, %7 : vector<16x64xf32>
    %10 = arith.addf %5, %9 : vector<16x64xf32>
    %cst_6 = arith.constant 0.797884583 : f32
    %11 = vector.broadcast %cst_6 : f32 to vector<16x64xf32>
    %12 = arith.mulf %11, %10 : vector<16x64xf32>
    %13 = math.tanh %12 : vector<16x64xf32>
    %cst_7 = arith.constant 1.000000e+00 : f32
    %14 = vector.broadcast %cst_7 : f32 to vector<16x64xf32>
    %15 = arith.addf %14, %13 : vector<16x64xf32>
    %cst_8 = arith.constant 5.000000e-01 : f32
    %16 = vector.broadcast %cst_8 : f32 to vector<16x64xf32>
    %17 = arith.mulf %16, %15 : vector<16x64xf32>
    %18 = arith.mulf %5, %17 : vector<16x64xf32>
    %19 = arith.truncf %18 : vector<16x64xf32> to vector<16x64xbf16>
    %c0_9 = arith.constant 0 : index
    %c0_10 = arith.constant 0 : index
    %20 = vector.load %arg4[%c0_9, %c0_10] : memref<16x64xbf16, #tpu.memory_space<vmem>>, vector<16x64xbf16>
    tpu.vector_store %arg4[%c0_9, %c0_10], %19 {strides = array<i32>} : memref<16x64xbf16, #tpu.memory_space<vmem>>, vector<16x64xbf16>,
    return
  }
  func.func @transform_0(%arg0: i32) -> (i32, i32) {
    %c0_i32 = arith.constant 0 : i32
    %c0_i32_0 = arith.constant 0 : i32
    return %arg0, %c0_i32 : i32, i32
  }
  func.func @transform_1(%arg0: i32) -> (i32, i32) {
    %c0_i32 = arith.constant 0 : i32
    %c0_i32_0 = arith.constant 0 : i32
    %c0_i32_1 = arith.constant 0 : i32
    return %c0_i32, %c0_i32_0 : i32, i32
  }
  func.func @transform_2(%arg0: i32) -> (i32, i32) {
    %c0_i32 = arith.constant 0 : i32
    %c0_i32_0 = arith.constant 0 : i32
    %c0_i32_1 = arith.constant 0 : i32
    return %c0_i32, %c0_i32_0 : i32, i32
  }
  func.func @transform_3(%arg0: i32) -> (i32, i32) {
    %c0_i32 = arith.constant 0 : i32
    %c0_i32_0 = arith.constant 0 : i32
    return %arg0, %c0_i32 : i32, i32
  }
}

module attributes {stable_mosaic.version = 11 : i64} {
  func.func @_linear_res_ln_kernel(%arg0: i32, %arg1: memref<16x64xbf16, #tpu.memory_space<vmem>>, %arg2: memref<64x32xbf16, #tpu.memory_space<vmem>>, %arg3: memref<1x32xf32, #tpu.memory_space<vmem>>, %arg4: memref<16x32xbf16, #tpu.memory_space<vmem>>, %arg5: memref<1x32xf32, #tpu.memory_space<vmem>>, %arg6: memref<1x32xf32, #tpu.memory_space<vmem>>, %arg7: memref<16x32xbf16, #tpu.memory_space<vmem>>) attributes {dimension_semantics = [#tpu.dimension_semantics<parallel>], iteration_bounds = array<i64: 1>, scalar_prefetch = 0 : i64, scratch_operands = 0 : i64, tpu.core_type = #tpu.core_type<tc>, window_params = [{transform_indices = @transform_0, window_bounds = array<i64: 16, 64>}, {pipeline_mode = #tpu.pipeline_mode<synchronous>, transform_indices = @transform_1, window_bounds = array<i64: 64, 32>}, {pipeline_mode = #tpu.pipeline_mode<synchronous>, transform_indices = @transform_2, window_bounds = array<i64: 1, 32>}, {transform_indices = @transform_3, window_bounds = array<i64: 16, 32>}, {pipeline_mode = #tpu.pipeline_mode<synchronous>, transform_indices = @transform_4, window_bounds = array<i64: 1, 32>}, {pipeline_mode = #tpu.pipeline_mode<synchronous>, transform_indices = @transform_5, window_bounds = array<i64: 1, 32>}, {transform_indices = @transform_6, window_bounds = array<i64: 16, 32>}]} {
    %c0 = arith.constant 0 : index
    %c0_0 = arith.constant 0 : index
    %0 = vector.load %arg1[%c0, %c0_0] : memref<16x64xbf16, #tpu.memory_space<vmem>>, vector<16x64xbf16>
    %c0_1 = arith.constant 0 : index
    %c0_2 = arith.constant 0 : index
    %1 = vector.load %arg2[%c0_1, %c0_2] : memref<64x32xbf16, #tpu.memory_space<vmem>>, vector<64x32xbf16>
    %cst = arith.constant dense<0.000000e+00> : vector<16x32xf32>
    %2 = tpu.matmul %0, %1, %cst {dimension_numbers = #tpu.dot_dimension_numbers<[1], [0], [0], [1], [0, 0, 1, 1], [], []>} : vector<16x64xbf16>, vector<64x32xbf16>, vector<16x32xf32> -> vector<16x32xf32>
    %c0_3 = arith.constant 0 : index
    %c0_4 = arith.constant 0 : index
    %3 = vector.load %arg3[%c0_3, %c0_4] : memref<1x32xf32, #tpu.memory_space<vmem>>, vector<1x32xf32>
    %4 = vector.broadcast %3 : vector<1x32xf32> to vector<16x32xf32>
    %5 = arith.addf %2, %4 : vector<16x32xf32>
    %c0_5 = arith.constant 0 : index
    %c0_6 = arith.constant 0 : index
    %6 = vector.load %arg4[%c0_5, %c0_6] : memref<16x32xbf16, #tpu.memory_space<vmem>>, vector<16x32xbf16>
    %7 = arith.extf %6 : vector<16x32xbf16> to vector<16x32xf32>
    %8 = arith.addf %5, %7 : vector<16x32xf32>
    %cst_7 = arith.constant dense<0.000000e+00> : vector<16xf32>
    %9 = vector.multi_reduction <add>, %8, %cst_7 [1] : vector<16x32xf32> to vector<16xf32>
    %10 = vector.shape_cast %9 : vector<16xf32> to vector<16x1xf32>
    %cst_8 = arith.constant 3.200000e+01 : f32
    %11 = vector.broadcast %cst_8 : f32 to vector<16x1xf32>
    %12 = arith.divf %10, %11 : vector<16x1xf32>
    %13 = vector.broadcast %12 : vector<16x1xf32> to vector<16x32xf32>
    %14 = arith.subf %8, %13 : vector<16x32xf32>
    %15 = arith.mulf %14, %14 : vector<16x32xf32>
    %cst_9 = arith.constant dense<0.000000e+00> : vector<16xf32>
    %16 = vector.multi_reduction <add>, %15, %cst_9 [1] : vector<16x32xf32> to vector<16xf32>
    %17 = vector.shape_cast %16 : vector<16xf32> to vector<16x1xf32>
    %cst_10 = arith.constant 3.200000e+01 : f32
    %18 = vector.broadcast %cst_10 : f32 to vector<16x1xf32>
    %19 = arith.divf %17, %18 : vector<16x1xf32>
    %cst_11 = arith.constant 9.99999996E-13 : f32
    %20 = vector.broadcast %cst_11 : f32 to vector<16x1xf32>
    %21 = arith.addf %19, %20 : vector<16x1xf32>
    %22 = math.rsqrt %21 : vector<16x1xf32>
    %23 = vector.broadcast %12 : vector<16x1xf32> to vector<16x32xf32>
    %24 = arith.subf %8, %23 : vector<16x32xf32>
    %25 = vector.broadcast %22 : vector<16x1xf32> to vector<16x32xf32>
    %26 = arith.mulf %24, %25 : vector<16x32xf32>
    %c0_12 = arith.constant 0 : index
    %c0_13 = arith.constant 0 : index
    %27 = vector.load %arg5[%c0_12, %c0_13] : memref<1x32xf32, #tpu.memory_space<vmem>>, vector<1x32xf32>
    %28 = vector.broadcast %27 : vector<1x32xf32> to vector<16x32xf32>
    %29 = arith.mulf %26, %28 : vector<16x32xf32>
    %c0_14 = arith.constant 0 : index
    %c0_15 = arith.constant 0 : index
    %30 = vector.load %arg6[%c0_14, %c0_15] : memref<1x32xf32, #tpu.memory_space<vmem>>, vector<1x32xf32>
    %31 = vector.broadcast %30 : vector<1x32xf32> to vector<16x32xf32>
    %32 = arith.addf %29, %31 : vector<16x32xf32>
    %33 = arith.truncf %32 : vector<16x32xf32> to vector<16x32xbf16>
    %c0_16 = arith.constant 0 : index
    %c0_17 = arith.constant 0 : index
    %34 = vector.load %arg7[%c0_16, %c0_17] : memref<16x32xbf16, #tpu.memory_space<vmem>>, vector<16x32xbf16>
    tpu.vector_store %arg7[%c0_16, %c0_17], %33 {strides = array<i32>} : memref<16x32xbf16, #tpu.memory_space<vmem>>, vector<16x32xbf16>,
    return
  }
  func.func @transform_0(%arg0: i32) -> (i32, i32) {
    %c0_i32 = arith.constant 0 : i32
    %c0_i32_0 = arith.constant 0 : i32
    return %arg0, %c0_i32 : i32, i32
  }
  func.func @transform_1(%arg0: i32) -> (i32, i32) {
    %c0_i32 = arith.constant 0 : i32
    %c0_i32_0 = arith.constant 0 : i32
    %c0_i32_1 = arith.constant 0 : i32
    return %c0_i32, %c0_i32_0 : i32, i32
  }
  func.func @transform_2(%arg0: i32) -> (i32, i32) {
    %c0_i32 = arith.constant 0 : i32
    %c0_i32_0 = arith.constant 0 : i32
    %c0_i32_1 = arith.constant 0 : i32
    return %c0_i32, %c0_i32_0 : i32, i32
  }
  func.func @transform_3(%arg0: i32) -> (i32, i32) {
    %c0_i32 = arith.constant 0 : i32
    %c0_i32_0 = arith.constant 0 : i32
    return %arg0, %c0_i32 : i32, i32
  }
  func.func @transform_4(%arg0: i32) -> (i32, i32) {
    %c0_i32 = arith.constant 0 : i32
    %c0_i32_0 = arith.constant 0 : i32
    %c0_i32_1 = arith.constant 0 : i32
    return %c0_i32, %c0_i32_0 : i32, i32
  }
  func.func @transform_5(%arg0: i32) -> (i32, i32) {
    %c0_i32 = arith.constant 0 : i32
    %c0_i32_0 = arith.constant 0 : i32
    %c0_i32_1 = arith.constant 0 : i32
    return %c0_i32, %c0_i32_0 : i32, i32
  }
  func.func @transform_6(%arg0: i32) -> (i32, i32) {
    %c0_i32 = arith.constant 0 : i32
    %c0_i32_0 = arith.constant 0 : i32
    return %arg0, %c0_i32 : i32, i32
  }
}

module attributes {stable_mosaic.version = 11 : i64} {
  func.func @_head_kernel(%arg0: memref<3x64xbf16, #tpu.memory_space<vmem>>, %arg1: memref<64x4xbf16, #tpu.memory_space<vmem>>, %arg2: memref<1x4xf32, #tpu.memory_space<vmem>>, %arg3: memref<3x1xi32, #tpu.memory_space<vmem>>, %arg4: memref<3x4xf32, #tpu.memory_space<vmem>>, %arg5: memref<1x1xf32, #tpu.memory_space<smem>>) attributes {dimension_semantics = [], scalar_prefetch = 0 : i64, scratch_operands = 0 : i64, tpu.core_type = #tpu.core_type<tc>} {
    %c0 = arith.constant 0 : index
    %c0_0 = arith.constant 0 : index
    %0 = vector.load %arg0[%c0, %c0_0] : memref<3x64xbf16, #tpu.memory_space<vmem>>, vector<3x64xbf16>
    %c0_1 = arith.constant 0 : index
    %c0_2 = arith.constant 0 : index
    %1 = vector.load %arg1[%c0_1, %c0_2] : memref<64x4xbf16, #tpu.memory_space<vmem>>, vector<64x4xbf16>
    %cst = arith.constant dense<0.000000e+00> : vector<3x4xf32>
    %2 = tpu.matmul %0, %1, %cst {dimension_numbers = #tpu.dot_dimension_numbers<[1], [0], [0], [1], [0, 0, 1, 1], [], []>} : vector<3x64xbf16>, vector<64x4xbf16>, vector<3x4xf32> -> vector<3x4xf32>
    %c0_3 = arith.constant 0 : index
    %c0_4 = arith.constant 0 : index
    %3 = vector.load %arg2[%c0_3, %c0_4] : memref<1x4xf32, #tpu.memory_space<vmem>>, vector<1x4xf32>
    %4 = vector.broadcast %3 : vector<1x4xf32> to vector<3x4xf32>
    %5 = arith.addf %2, %4 : vector<3x4xf32>
    %c0_5 = arith.constant 0 : index
    %c0_6 = arith.constant 0 : index
    %6 = vector.load %arg4[%c0_5, %c0_6] : memref<3x4xf32, #tpu.memory_space<vmem>>, vector<3x4xf32>
    tpu.vector_store %arg4[%c0_5, %c0_6], %5 {strides = array<i32>} : memref<3x4xf32, #tpu.memory_space<vmem>>, vector<3x4xf32>,
    %c0_7 = arith.constant 0 : index
    %c0_8 = arith.constant 0 : index
    %7 = vector.load %arg3[%c0_7, %c0_8] : memref<3x1xi32, #tpu.memory_space<vmem>>, vector<3x1xi32>
    %cst_9 = arith.constant dense<0xFF800000> : vector<3xf32>
    %8 = vector.multi_reduction <maximumf>, %5, %cst_9 [1] : vector<3x4xf32> to vector<3xf32>
    %9 = vector.shape_cast %8 : vector<3xf32> to vector<3x1xf32>
    %10 = vector.broadcast %9 : vector<3x1xf32> to vector<3x4xf32>
    %11 = arith.subf %5, %10 : vector<3x4xf32>
    %12 = math.exp %11 : vector<3x4xf32>
    %cst_10 = arith.constant dense<0.000000e+00> : vector<3xf32>
    %13 = vector.multi_reduction <add>, %12, %cst_10 [1] : vector<3x4xf32> to vector<3xf32>
    %14 = vector.shape_cast %13 : vector<3xf32> to vector<3x1xf32>
    %15 = math.log %14 : vector<3x1xf32>
    %16 = vector.broadcast %15 : vector<3x1xf32> to vector<3x4xf32>
    %17 = arith.subf %11, %16 : vector<3x4xf32>
    %18 = tpu.iota {dimensions = array<i32: 1>} : vector<3x4xi32>
    %19 = vector.broadcast %7 : vector<3x1xi32> to vector<3x4xi32>
    %20 = arith.cmpi eq, %18, %19 : vector<3x4xi32>
    %21 = arith.extui %20 : vector<3x4xi1> to vector<3x4xi32>
    %22 = arith.sitofp %21 : vector<3x4xi32> to vector<3x4xf32>
    %23 = arith.mulf %22, %17 : vector<3x4xf32>
    %cst_11 = arith.constant dense<0.000000e+00> : vector<3xf32>
    %24 = vector.multi_reduction <add>, %23, %cst_11 [1] : vector<3x4xf32> to vector<3xf32>
    %25 = vector.shape_cast %24 : vector<3xf32> to vector<3x1xf32>
    %cst_12 = arith.constant 0.000000e+00 : f32
    %26 = vector.broadcast %cst_12 : f32 to vector<3x1xf32>
    %27 = arith.subf %26, %25 : vector<3x1xf32>
    %c-1_i32 = arith.constant -1 : i32
    %28 = vector.broadcast %c-1_i32 : i32 to vector<3x1xi32>
    %29 = arith.cmpi ne, %7, %28 : vector<3x1xi32>
    %30 = arith.extui %29 : vector<3x1xi1> to vector<3x1xi32>
    %31 = arith.sitofp %30 : vector<3x1xi32> to vector<3x1xf32>
    %32 = arith.mulf %27, %31 : vector<3x1xf32>
    %33 = vector.shape_cast %32 : vector<3x1xf32> to vector<1x3x1xf32>
    %cst_13 = arith.constant dense<0.000000e+00> : vector<1xf32>
    %34 = vector.multi_reduction <add>, %33, %cst_13 [1, 2] : vector<1x3x1xf32> to vector<1xf32>
    %35 = vector.shape_cast %34 : vector<1xf32> to vector<1x1x1xf32>
    %36 = vector.extract %35[0, 0, 0] : f32 from vector<1x1x1xf32>
    %37 = vector.shape_cast %31 : vector<3x1xf32> to vector<1x3x1xf32>
    %cst_14 = arith.constant dense<0.000000e+00> : vector<1xf32>
    %38 = vector.multi_reduction <add>, %37, %cst_14 [1, 2] : vector<1x3x1xf32> to vector<1xf32>
    %39 = vector.shape_cast %38 : vector<1xf32> to vector<1x1x1xf32>
    %40 = vector.extract %39[0, 0, 0] : f32 from vector<1x1x1xf32>
    %41 = arith.divf %36, %40 : f32
    %c0_15 = arith.constant 0 : index
    %c0_16 = arith.constant 0 : index
    %42 = memref.load %arg5[%c0_15, %c0_16] : memref<1x1xf32, #tpu.memory_space<smem>>
    memref.store %41, %arg5[%c0_15, %c0_16] : memref<1x1xf32, #tpu.memory_space<smem>>
    return
  }
}

</mosaic_0001>

<llo_original>
// kernel: bert_re_forward.12
$region0: #{bert_re_forward.12}
  #allocation0 [shape = 'u32[]', space=smem, size = 0x4, offset = 0x4, fixed_abs, tag = 'smem constant byte address 0x4 - core index']
  #allocation1 [shape = 'u32[144,128]{1,0:T(1,128)}', space=vmem, size = 0x12000, scoped, tag = 'internal scratch']
  %s0 = inlined_call_operand.vmem [shape: bf16[16,32], index: 0, kind: input, shape index: {}]
  %s1 = inlined_call_operand.vmem [shape: bf16[16,32], index: 1, kind: input, shape index: {}]
  %s2 = inlined_call_operand.vmem [shape: bf16[1,32], index: 2, kind: input, shape index: {}]
  %s3 = inlined_call_operand.vmem [shape: f32[1,32], index: 3, kind: input, shape index: {}]
  %s4 = inlined_call_operand.vmem [shape: f32[1,32], index: 4, kind: input, shape index: {}]
  %s5 = inlined_call_operand.vmem [shape: bf16[16,32], index: 5, kind: output, shape index: {}]
  %s6 = sld [smem:[#allocation0]]
  $region30: #{bert_re_forward.12} parent=0
    _
  %s8 = ssub.s32 1, %s6
  %s9 = scalar_select 0, %s8, %s6
  // Predicated region
  $region2: #{bert_re_forward.12} parent=0 // pred_check
    _
  $region3: #{bert_re_forward.12} parent=0 // pred_check_branch
    %11 = sbr.rel (0) target = $region5
  $region4: #{bert_re_forward.12} parent=0 // pred_region
    _
  $region5: #{bert_re_forward.12} parent=0 // pred_fallthru
    _
  // Predicated region
  $region6: #{bert_re_forward.12} parent=0 // pred_check
    _
  $region7: #{bert_re_forward.12} parent=0 // pred_check_branch
    %13 = sbr.rel (0) target = $region9
  $region8: #{bert_re_forward.12} parent=0 // pred_region
    _
  $region9: #{bert_re_forward.12} parent=0 // pred_fallthru
    _
  // Predicated region
  $region10: #{bert_re_forward.12} parent=0 // pred_check
    _
  $region11: #{bert_re_forward.12} parent=0 // pred_check_branch
    %15 = sbr.rel (0) target = $region13
  $region12: #{bert_re_forward.12} parent=0 // pred_region
    _
  $region13: #{bert_re_forward.12} parent=0 // pred_fallthru
    _
  // Predicated region
  $region14: #{bert_re_forward.12} parent=0 // pred_check
    _
  $region15: #{bert_re_forward.12} parent=0 // pred_check_branch
    %17 = sbr.rel (0) target = $region17
  $region16: #{bert_re_forward.12} parent=0 // pred_region
    _
  $region17: #{bert_re_forward.12} parent=0 // pred_fallthru
    _
  // Predicated region
  $region18: #{bert_re_forward.12} parent=0 // pred_check
    _
  $region19: #{bert_re_forward.12} parent=0 // pred_check_branch
    %19 = sbr.rel (0) target = $region21
  $region20: #{bert_re_forward.12} parent=0 // pred_region
    _
  $region21: #{bert_re_forward.12} parent=0 // pred_fallthru
    _
  %v20 = vld [vmem:[%s0] sm:$0xf]
  %v21 = vld [vmem:[%s0 + $0x4] sm:$0xf]
  %v22 = vunpack.c.l.bf16 %v20
  %v23 = vunpack.c.l.bf16 %v21
  %v24 = vld [vmem:[%s1] sm:$0xf]
  %v25 = vld [vmem:[%s1 + $0x4] sm:$0xf]
  %v26 = vunpack.c.l.bf16 %v24
  %v27 = vunpack.c.l.bf16 %v25
  %v28 = vadd.f32 %v22, %v26
  %v29 = vadd.f32 %v23, %v27
  %v30 = vld [vmem:[%s2] sm:$0x1]
  %v31 = vunpack.c.l.bf16 %v30
  %v32 = vlaneseq
  %v33 = vshrl.u32 %v32, 7
  %v34 = vsub.s32 0, %v33
  %v35 = vrot.slane %v31, %v34
  %v36 = vadd.f32 %v28, %v35
  %v37 = vadd.f32 %v29, %v35
  %vm38 = vcmask 261120
  %v39 = vsel %vm38, %v36, 0.0
  %40 = vadd.xlane.f32.xlu0 %v39
  %v41 = vpop.xlane.xlu0 %40
  %v42 = vsel %vm38, %v37, 0.0
  %43 = vadd.xlane.f32.xlu0 %v42
  %v44 = vpop.xlane.xlu0 %43
  %v45 = vrcp.pop 32.0
  %v46 = vmul.f32 %v41, %v45
  %v47 = vmul.f32 %v44, %v45
  %v48 = vsub.f32 %v36, %v46
  %v49 = vsub.f32 %v37, %v47
  %v50 = vmul.f32 %v48, %v48
  %v51 = vmul.f32 %v49, %v49
  %v52 = vsel %vm38, %v50, 0.0
  %53 = vadd.xlane.f32.xlu0 %v52
  %v54 = vpop.xlane.xlu0 %53
  %v55 = vsel %vm38, %v51, 0.0
  %56 = vadd.xlane.f32.xlu0 %v55
  %v57 = vpop.xlane.xlu0 %56
  %v58 = vmul.f32 %v54, %v45
  %v59 = vmul.f32 %v57, %v45
  %v60 = vadd.f32 %v58, 1e-12
  %v61 = vadd.f32 %v59, 1e-12
  %v62 = vrsqrt.pop %v60
  %v63 = vrsqrt.pop %v61
  %v64 = vmul.f32 %v48, %v62
  %v65 = vmul.f32 %v49, %v63
  %v66 = vld [vmem:[%s3] sm:$0x1]
  %v68 = vlaneseq
  %v69 = vshrl.u32 %v68, 7
  %v70 = vsub.s32 0, %v69
  %v71 = vrot.slane %v66, %v70
  %v73 = vmul.f32 %v64, %v71
  %v74 = vmul.f32 %v65, %v71
  %v75 = vld [vmem:[%s4] sm:$0x1]
  %v77 = vlaneseq
  %v78 = vshrl.u32 %v77, 7
  %v79 = vsub.s32 0, %v78
  %v80 = vrot.slane %v75, %v79
  %v82 = vadd.f32 %v73, %v80
  %v83 = vadd.f32 %v74, %v80
  %v84 = vpack.c.bf16 %v83, %v82
  %v86 = vunpack.c.l.b16 %v84
  %v87 = vunpack.c.h.b16 %v84
  %v88 = vpack.c.b16 %v86, %v86
  %v89 = vpack.c.b16 %v87, %v87
  %vm92 = vcmask 257024
  %93 = vst.msk [vmem:[%s5] sm:$0xf] %vm92, %v88
  %94 = vst.msk [vmem:[%s5 + $0x4] sm:$0xf] %vm92, %v89
  // Predicated region
  $region22: #{bert_re_forward.12} parent=0 // pred_check
    _
  $region23: #{bert_re_forward.12} parent=0 // pred_check_branch
    %96 = sbr.rel (0) target = $region25
  $region24: #{bert_re_forward.12} parent=0 // pred_region
    _
  $region25: #{bert_re_forward.12} parent=0 // pred_fallthru
    _
  // Predicated region
  $region26: #{bert_re_forward.12} parent=0 // pred_check
    _
  $region27: #{bert_re_forward.12} parent=0 // pred_check_branch
    %98 = sbr.rel (0) target = $region29
  $region28: #{bert_re_forward.12} parent=0 // pred_region
    _
  $region29: #{bert_re_forward.12} parent=0 // pred_fallthru
    _

// kernel: bert_re_forward.15
$region0: #{bert_re_forward.15}
  #allocation0 [shape = 'u32[]', space=smem, size = 0x4, offset = 0x4, fixed_abs, tag = 'smem constant byte address 0x4 - core index']
  #allocation1 [shape = 'u32[144,128]{1,0:T(1,128)}', space=vmem, size = 0x12000, scoped, tag = 'internal scratch']
  %s0 = inlined_call_operand.vmem [shape: bf16[16,32], index: 0, kind: input, shape index: {}]
  %s1 = inlined_call_operand.vmem [shape: bf16[32,32], index: 1, kind: input, shape index: {}]
  %s2 = inlined_call_operand.vmem [shape: f32[1,32], index: 2, kind: input, shape index: {}]
  %s3 = inlined_call_operand.vmem [shape: bf16[16,32], index: 3, kind: input, shape index: {}]
  %s4 = inlined_call_operand.vmem [shape: f32[1,32], index: 4, kind: input, shape index: {}]
  %s5 = inlined_call_operand.vmem [shape: f32[1,32], index: 5, kind: input, shape index: {}]
  %s6 = inlined_call_operand.vmem [shape: bf16[16,32], index: 6, kind: output, shape index: {}]
  %s7 = sld [smem:[#allocation0]]
  $region34: #{bert_re_forward.15} parent=0
    _
  %s9 = ssub.s32 1, %s7
  %s10 = scalar_select 0, %s9, %s7
  // Predicated region
  $region2: #{bert_re_forward.15} parent=0 // pred_check
    _
  $region3: #{bert_re_forward.15} parent=0 // pred_check_branch
    %12 = sbr.rel (0) target = $region5
  $region4: #{bert_re_forward.15} parent=0 // pred_region
    _
  $region5: #{bert_re_forward.15} parent=0 // pred_fallthru
    _
  // Predicated region
  $region6: #{bert_re_forward.15} parent=0 // pred_check
    _
  $region7: #{bert_re_forward.15} parent=0 // pred_check_branch
    %14 = sbr.rel (0) target = $region9
  $region8: #{bert_re_forward.15} parent=0 // pred_region
    _
  $region9: #{bert_re_forward.15} parent=0 // pred_fallthru
    _
  // Predicated region
  $region10: #{bert_re_forward.15} parent=0 // pred_check
    _
  $region11: #{bert_re_forward.15} parent=0 // pred_check_branch
    %16 = sbr.rel (0) target = $region13
  $region12: #{bert_re_forward.15} parent=0 // pred_region
    _
  $region13: #{bert_re_forward.15} parent=0 // pred_fallthru
    _
  // Predicated region
  $region14: #{bert_re_forward.15} parent=0 // pred_check
    _
  $region15: #{bert_re_forward.15} parent=0 // pred_check_branch
    %18 = sbr.rel (0) target = $region17
  $region16: #{bert_re_forward.15} parent=0 // pred_region
    _
  $region17: #{bert_re_forward.15} parent=0 // pred_fallthru
    _
  // Predicated region
  $region18: #{bert_re_forward.15} parent=0 // pred_check
    _
  $region19: #{bert_re_forward.15} parent=0 // pred_check_branch
    %20 = sbr.rel (0) target = $region21
  $region20: #{bert_re_forward.15} parent=0 // pred_region
    _
  $region21: #{bert_re_forward.15} parent=0 // pred_fallthru
    _
  // Predicated region
  $region22: #{bert_re_forward.15} parent=0 // pred_check
    _
  $region23: #{bert_re_forward.15} parent=0 // pred_check_branch
    %22 = sbr.rel (0) target = $region25
  $region24: #{bert_re_forward.15} parent=0 // pred_region
    _
  $region25: #{bert_re_forward.15} parent=0 // pred_fallthru
    _
  %v24 = vld [vmem:[%s0] sm:$0xf]
  %v25 = vld [vmem:[%s0 + $0x4] sm:$0xf]
  %v26 = vld [vmem:[%s1] sm:$0xf]
  %v27 = vld [vmem:[%s1 + $0x4] sm:$0xf]
  %v28 = vld [vmem:[%s1 + $0x8] sm:$0xf]
  %v29 = vld [vmem:[%s1 + $0xc] sm:$0xf]
  %v30 = vld [vmem:[%s2] sm:$0x1]
  %v32 = vlaneseq
  %v33 = vshrl.u32 %v32, 7
  %v34 = vsub.s32 0, %v33
  %v35 = vrot.slane %v30, %v34
  %v39 = vunpack.c.l.b16 %v24
  %v40 = vunpack.c.l.b16 %v25
  %v41 = vpack.c.b16 %v40, %v39
  %v46 = vunpack.c.l.b16 %v26
  %v47 = vunpack.c.l.b16 %v27
  %v48 = vunpack.c.l.b16 %v28
  %v49 = vunpack.c.l.b16 %v29
  %v50 = vpack.c.b16 %v47, %v46
  %v51 = vpack.c.b16 %v49, %v48
  %vm54 = vcmask 261120
  %v56 = vsel %vm54, %v41, 0
  %58 = vmatprep.subr.bf16.mxu0 0
  %59 = vmatpush1.bf16.msra.mxu0 0
  %60 = vmatprep.subr.bf16.mxu0 0
  %61 = vmatpush1.bf16.msra.mxu0 0
  %62 = vmatprep.subr.bf16.mxu0 0
  %63 = vmatpush1.bf16.msra.mxu0 0
  %64 = vmatprep.subr.bf16.mxu0 0
  %65 = vmatpush1.bf16.msra.mxu0 0
  %66 = vmatprep.subr.bf16.mxu0 0
  %67 = vmatpush1.bf16.msra.mxu0 0
  %68 = vmatprep.subr.bf16.mxu0 0
  %69 = vmatpush1.bf16.msra.mxu0 0
  %70 = vmatprep.subr.bf16.mxu0 0
  %71 = vmatpush1.bf16.msra.mxu0 %v51
  %72 = vmatprep.subr.bf16.mxu0 0
  %73 = vmatpush1.bf16.msra.mxu0 %v50
  %74 = vmatprep.subr.bf16.mxu0 0
  %75 = vmatpush2.bf16.msra.mxu0 0
  %76 = vmatprep.subr.bf16.mxu0 0
  %77 = vmatpush2.bf16.msra.mxu0 0
  %78 = vmatprep.subr.bf16.mxu0 0
  %79 = vmatpush2.bf16.msra.mxu0 0
  %80 = vmatprep.subr.bf16.mxu0 0
  %81 = vmatpush2.bf16.msra.mxu0 0
  %82 = vmatprep.subr.bf16.mxu0 0
  %83 = vmatpush2.bf16.msra.mxu0 0
  %84 = vmatprep.subr.bf16.mxu0 0
  %85 = vmatpush2.bf16.msra.mxu0 0
  %86 = vmatprep.subr.bf16.mxu0 0
  %87 = vmatpush2.bf16.msra.mxu0 0
  %88 = vmatprep.subr.bf16.mxu0 0
  %89 = vmatpush2.bf16.msra.mxu0 0
  %90 = vmatprep.mubr.bf16.mxu0 0
  %91 = vmatmul.mubr.bf16.gmra.mxu0 %v56
  %v92 = vpop.f32.mrf.mxu0
  %v93 = vadd.f32 %v35, %v92
  %v94 = vpop.f32.mrf.mxu0
  %v95 = vpop.f32.mrf.mxu0
  %v96 = vadd.f32 %v35, %v95
  %v97 = vpop.f32.mrf.mxu0
  %98 = vdwg.mxu0
  %v99 = vld [vmem:[%s3] sm:$0xf]
  %v100 = vld [vmem:[%s3 + $0x4] sm:$0xf]
  %v101 = vunpack.c.l.bf16 %v99
  %v102 = vunpack.c.l.bf16 %v100
  %v103 = vadd.f32 %v93, %v101
  %v104 = vadd.f32 %v96, %v102
  %v105 = vsel %vm54, %v103, 0.0
  %106 = vadd.xlane.f32.xlu0 %v105
  %v107 = vpop.xlane.xlu0 %106
  %v108 = vsel %vm54, %v104, 0.0
  %109 = vadd.xlane.f32.xlu0 %v108
  %v110 = vpop.xlane.xlu0 %109
  %v111 = vrcp.pop 32.0
  %v112 = vmul.f32 %v107, %v111
  %v113 = vmul.f32 %v110, %v111
  %v114 = vsub.f32 %v103, %v112
  %v115 = vsub.f32 %v104, %v113
  %v116 = vmul.f32 %v114, %v114
  %v117 = vmul.f32 %v115, %v115
  %v118 = vsel %vm54, %v116, 0.0
  %119 = vadd.xlane.f32.xlu0 %v118
  %v120 = vpop.xlane.xlu0 %119
  %v121 = vsel %vm54, %v117, 0.0
  %122 = vadd.xlane.f32.xlu0 %v121
  %v123 = vpop.xlane.xlu0 %122
  %v124 = vmul.f32 %v120, %v111
  %v125 = vmul.f32 %v123, %v111
  %v126 = vadd.f32 %v124, 1e-12
  %v127 = vadd.f32 %v125, 1e-12
  %v128 = vrsqrt.pop %v126
  %v129 = vrsqrt.pop %v127
  %v130 = vmul.f32 %v114, %v128
  %v131 = vmul.f32 %v115, %v129
  %v132 = vld [vmem:[%s4] sm:$0x1]
  %v134 = vlaneseq
  %v135 = vshrl.u32 %v134, 7
  %v136 = vsub.s32 0, %v135
  %v137 = vrot.slane %v132, %v136
  %v139 = vmul.f32 %v130, %v137
  %v140 = vmul.f32 %v131, %v137
  %v141 = vld [vmem:[%s5] sm:$0x1]
  %v143 = vlaneseq
  %v144 = vshrl.u32 %v143, 7
  %v145 = vsub.s32 0, %v144
  %v146 = vrot.slane %v141, %v145
  %v148 = vadd.f32 %v139, %v146
  %v149 = vadd.f32 %v140, %v146
  %v150 = vpack.c.bf16 %v149, %v148
  %v152 = vunpack.c.l.b16 %v150
  %v153 = vunpack.c.h.b16 %v150
  %v154 = vpack.c.b16 %v152, %v152
  %v155 = vpack.c.b16 %v153, %v153
  %vm158 = vcmask 257024
  %159 = vst.msk [vmem:[%s6] sm:$0xf] %vm158, %v154
  %160 = vst.msk [vmem:[%s6 + $0x4] sm:$0xf] %vm158, %v155
  // Predicated region
  $region26: #{bert_re_forward.15} parent=0 // pred_check
    _
  $region27: #{bert_re_forward.15} parent=0 // pred_check_branch
    %162 = sbr.rel (0) target = $region29
  $region28: #{bert_re_forward.15} parent=0 // pred_region
    _
  $region29: #{bert_re_forward.15} parent=0 // pred_fallthru
    _
  // Predicated region
  $region30: #{bert_re_forward.15} parent=0 // pred_check
    _
  $region31: #{bert_re_forward.15} parent=0 // pred_check_branch
    %164 = sbr.rel (0) target = $region33
  $region32: #{bert_re_forward.15} parent=0 // pred_region
    _
  $region33: #{bert_re_forward.15} parent=0 // pred_fallthru
    _

// kernel: bert_re_forward.13
$region0: #{bert_re_forward.13}
  #allocation0 [shape = 'u32[]', space=smem, size = 0x4, offset = 0x4, fixed_abs, tag = 'smem constant byte address 0x4 - core index']
  #allocation1 [shape = 'u32[144,128]{1,0:T(1,128)}', space=vmem, size = 0x12000, scoped, tag = 'internal scratch']
  %s0 = inlined_call_operand.vmem [shape: bf16[16,32], index: 0, kind: input, shape index: {}]
  %s1 = inlined_call_operand.vmem [shape: bf16[32,96], index: 1, kind: input, shape index: {}]
  %s2 = inlined_call_operand.vmem [shape: f32[1,96], index: 2, kind: input, shape index: {}]
  %s3 = inlined_call_operand.vmem [shape: bf16[16,32], index: 3, kind: output, shape index: {0}]
  %s4 = inlined_call_operand.vmem [shape: bf16[32,16], index: 4, kind: output, shape index: {1}]
  %s5 = inlined_call_operand.vmem [shape: bf16[16,32], index: 5, kind: output, shape index: {2}]
  %6 = xla_tuple %s3, %s4, %s5
  %s7 = sld [smem:[#allocation0]]
  $region38: #{bert_re_forward.13} parent=0
    _
  %s9 = ssub.s32 1, %s7
  %s10 = scalar_select 0, %s9, %s7
  // Predicated region
  $region2: #{bert_re_forward.13} parent=0 // pred_check
    _
  $region3: #{bert_re_forward.13} parent=0 // pred_check_branch
    %12 = sbr.rel (0) target = $region5
  $region4: #{bert_re_forward.13} parent=0 // pred_region
    _
  $region5: #{bert_re_forward.13} parent=0 // pred_fallthru
    _
  // Predicated region
  $region6: #{bert_re_forward.13} parent=0 // pred_check
    _
  $region7: #{bert_re_forward.13} parent=0 // pred_check_branch
    %14 = sbr.rel (0) target = $region9
  $region8: #{bert_re_forward.13} parent=0 // pred_region
    _
  $region9: #{bert_re_forward.13} parent=0 // pred_fallthru
    _
  // Predicated region
  $region10: #{bert_re_forward.13} parent=0 // pred_check
    _
  $region11: #{bert_re_forward.13} parent=0 // pred_check_branch
    %16 = sbr.rel (0) target = $region13
  $region12: #{bert_re_forward.13} parent=0 // pred_region
    _
  $region13: #{bert_re_forward.13} parent=0 // pred_fallthru
    _
  %v18 = vld [vmem:[%s0] sm:$0xf]
  %v19 = vld [vmem:[%s0 + $0x4] sm:$0xf]
  %v20 = vld [vmem:[%s1] sm:$0xf]
  %v21 = vld [vmem:[%s1 + $0x4] sm:$0xf]
  %v22 = vld [vmem:[%s1 + $0x8] sm:$0xf]
  %v23 = vld [vmem:[%s1 + $0xc] sm:$0xf]
  %v24 = vld [vmem:[%s2] sm:$0x1]
  %v26 = vlaneseq
  %v27 = vshrl.u32 %v26, 7
  %v28 = vsub.s32 0, %v27
  %v29 = vrot.slane %v24, %v28
  %v33 = vunpack.c.l.b16 %v18
  %v34 = vunpack.c.l.b16 %v19
  %v35 = vpack.c.b16 %v34, %v33
  %v40 = vunpack.c.l.b16 %v20
  %v41 = vunpack.c.l.b16 %v21
  %v42 = vunpack.c.l.b16 %v22
  %v43 = vunpack.c.l.b16 %v23
  %v44 = vpack.c.b16 %v41, %v40
  %v45 = vpack.c.b16 %v43, %v42
  %vm48 = vcmask 261120
  %v50 = vsel %vm48, %v35, 0
  %52 = vmatprep.subr.bf16.mxu0 0
  %53 = vmatpush1.bf16.msra.mxu0 0
  %54 = vmatprep.subr.bf16.mxu0 0
  %55 = vmatpush1.bf16.msra.mxu0 0
  %56 = vmatprep.subr.bf16.mxu0 0
  %57 = vmatpush1.bf16.msra.mxu0 0
  %58 = vmatprep.subr.bf16.mxu0 0
  %59 = vmatpush1.bf16.msra.mxu0 0
  %60 = vmatprep.subr.bf16.mxu0 0
  %61 = vmatpush1.bf16.msra.mxu0 0
  %62 = vmatprep.subr.bf16.mxu0 0
  %63 = vmatpush1.bf16.msra.mxu0 0
  %64 = vmatprep.subr.bf16.mxu0 0
  %65 = vmatpush1.bf16.msra.mxu0 %v45
  %66 = vmatprep.subr.bf16.mxu0 0
  %67 = vmatpush1.bf16.msra.mxu0 %v44
  %68 = vmatprep.subr.bf16.mxu0 0
  %69 = vmatpush2.bf16.msra.mxu0 0
  %70 = vmatprep.subr.bf16.mxu0 0
  %71 = vmatpush2.bf16.msra.mxu0 0
  %72 = vmatprep.subr.bf16.mxu0 0
  %73 = vmatpush2.bf16.msra.mxu0 0
  %74 = vmatprep.subr.bf16.mxu0 0
  %75 = vmatpush2.bf16.msra.mxu0 0
  %76 = vmatprep.subr.bf16.mxu0 0
  %77 = vmatpush2.bf16.msra.mxu0 0
  %78 = vmatprep.subr.bf16.mxu0 0
  %79 = vmatpush2.bf16.msra.mxu0 0
  %80 = vmatprep.subr.bf16.mxu0 0
  %81 = vmatpush2.bf16.msra.mxu0 0
  %82 = vmatprep.subr.bf16.mxu0 0
  %83 = vmatpush2.bf16.msra.mxu0 0
  %84 = vmatprep.mubr.bf16.mxu0 0
  %85 = vmatmul.mubr.bf16.gmra.mxu0 %v50
  %v86 = vpop.f32.mrf.mxu0
  %v87 = vadd.f32 %v29, %v86
  %v88 = vpop.f32.mrf.mxu0
  %v89 = vpop.f32.mrf.mxu0
  %v90 = vadd.f32 %v29, %v89
  %v91 = vpop.f32.mrf.mxu0
  %92 = vdwg.mxu0
  %v93 = vmul.f32 %v87, 0.25
  %v94 = vmul.f32 %v90, 0.25
  %v95 = vpack.c.bf16 %v94, %v93
  %v97 = vunpack.c.l.b16 %v95
  %v98 = vunpack.c.h.b16 %v95
  %v99 = vpack.c.b16 %v97, %v97
  %v100 = vpack.c.b16 %v98, %v98
  %vm103 = vcmask 257024
  %104 = vst.msk [vmem:[%s3] sm:$0xf] %vm103, %v99
  %105 = vst.msk [vmem:[%s3 + $0x4] sm:$0xf] %vm103, %v100
  %108 = vrot.lane.b32.xlu0 %v87, 96
  %v109 = vpop.permute.xlu0 %108
  %110 = vrot.lane.b32.xlu0 %v90, 96
  %v111 = vpop.permute.xlu0 %110
  %114 = vxpose.xlu0.b32.start [1/16] %v109, 128
  %115 = vxpose.xlu0.b32.cont [2/16] %v111, 128
  %116 = vxpose.xlu0.b32.cont [3/16] 0.0, 128
  %117 = vxpose.xlu0.b32.cont [4/16] 0.0, 128
  %118 = vxpose.xlu0.b32.cont [5/16] 0.0, 128
  %119 = vxpose.xlu0.b32.cont [6/16] 0.0, 128
  %120 = vxpose.xlu0.b32.cont [7/16] 0.0, 128
  %121 = vxpose.xlu0.b32.cont [8/16] 0.0, 128
  %122 = vxpose.xlu0.b32.cont [9/16] 0.0, 128
  %123 = vxpose.xlu0.b32.cont [10/16] 0.0, 128
  %124 = vxpose.xlu0.b32.cont [11/16] 0.0, 128
  %125 = vxpose.xlu0.b32.cont [12/16] 0.0, 128
  %126 = vxpose.xlu0.b32.cont [13/16] 0.0, 128
  %127 = vxpose.xlu0.b32.cont [14/16] 0.0, 128
  %128 = vxpose.xlu0.b32.cont [15/16] 0.0, 128
  %129 = vxpose.xlu0.b32.end [16/16] 0.0, 128
  %v130 = vpop.trf.xlu0
  %v131 = vpop.trf.xlu0
  %v132 = vpop.trf.xlu0
  %v133 = vpop.trf.xlu0
  %v134 = vpop.trf.xlu0
  %v135 = vpop.trf.xlu0
  %v136 = vpop.trf.xlu0
  %v137 = vpop.trf.xlu0
  %v138 = vpop.trf.xlu0
  %v139 = vpop.trf.xlu0
  %v140 = vpop.trf.xlu0
  %v141 = vpop.trf.xlu0
  %v142 = vpop.trf.xlu0
  %v143 = vpop.trf.xlu0
  %v144 = vpop.trf.xlu0
  %v145 = vpop.trf.xlu0
  %v146 = vpack.c.bf16 %v131, %v130
  %v147 = vpack.c.bf16 %v133, %v132
  %v150 = vunpack.c.l.b16 %v146
  %v151 = vunpack.c.h.b16 %v146
  %v152 = vunpack.c.l.b16 %v147
  %v153 = vunpack.c.h.b16 %v147
  %v154 = vpack.c.b16 %v150, %v150
  %v155 = vpack.c.b16 %v151, %v151
  %v156 = vpack.c.b16 %v152, %v152
  %v157 = vpack.c.b16 %v153, %v153
  %vm162 = vcmask 125952
  %163 = vst.msk [vmem:[%s4] sm:$0xf] %vm162, %v154
  %164 = vst.msk [vmem:[%s4 + $0x4] sm:$0xf] %vm162, %v155
  %165 = vst.msk [vmem:[%s4 + $0x8] sm:$0xf] %vm162, %v156
  %166 = vst.msk [vmem:[%s4 + $0xc] sm:$0xf] %vm162, %v157
  %v167 = vpack.c.bf16 %v90, %v87
  %v169 = vunpack.c.l.b16 %v167
  %v170 = vunpack.c.h.b16 %v167
  %v171 = vpack.c.b16 %v169, %v169
  %v172 = vpack.c.b16 %v170, %v170
  %173 = vrot.lane.b32.xlu0 %v171, 64
  %v174 = vpop.permute.xlu0 %173
  %175 = vrot.lane.b32.xlu0 %v172, 64
  %v176 = vpop.permute.xlu0 %175
  %179 = vst.msk [vmem:[%s5] sm:$0xf] %vm103, %v174
  %180 = vst.msk [vmem:[%s5 + $0x4] sm:$0xf] %vm103, %v176
  // Predicated region
  $region14: #{bert_re_forward.13} parent=0 // pred_check
    _
  $region15: #{bert_re_forward.13} parent=0 // pred_check_branch
    %182 = sbr.rel (0) target = $region17
  $region16: #{bert_re_forward.13} parent=0 // pred_region
    _
  $region17: #{bert_re_forward.13} parent=0 // pred_fallthru
    _
  // Predicated region
  $region18: #{bert_re_forward.13} parent=0 // pred_check
    _
  $region19: #{bert_re_forward.13} parent=0 // pred_check_branch
    %184 = sbr.rel (0) target = $region21
  $region20: #{bert_re_forward.13} parent=0 // pred_region
    _
  $region21: #{bert_re_forward.13} parent=0 // pred_fallthru
    _
  // Predicated region
  $region22: #{bert_re_forward.13} parent=0 // pred_check
    _
  $region23: #{bert_re_forward.13} parent=0 // pred_check_branch
    %186 = sbr.rel (0) target = $region25
  $region24: #{bert_re_forward.13} parent=0 // pred_region
    _
  $region25: #{bert_re_forward.13} parent=0 // pred_fallthru
    _
  // Predicated region
  $region26: #{bert_re_forward.13} parent=0 // pred_check
    _
  $region27: #{bert_re_forward.13} parent=0 // pred_check_branch
    %188 = sbr.rel (0) target = $region29
  $region28: #{bert_re_forward.13} parent=0 // pred_region
    _
  $region29: #{bert_re_forward.13} parent=0 // pred_fallthru
    _
  // Predicated region
  $region30: #{bert_re_forward.13} parent=0 // pred_check
    _
  $region31: #{bert_re_forward.13} parent=0 // pred_check_branch
    %190 = sbr.rel (0) target = $region33
  $region32: #{bert_re_forward.13} parent=0 // pred_region
    _
  $region33: #{bert_re_forward.13} parent=0 // pred_fallthru
    _
  // Predicated region
  $region34: #{bert_re_forward.13} parent=0 // pred_check
    _
  $region35: #{bert_re_forward.13} parent=0 // pred_check_branch
    %192 = sbr.rel (0) target = $region37
  $region36: #{bert_re_forward.13} parent=0 // pred_region
    _
  $region37: #{bert_re_forward.13} parent=0 // pred_fallthru
    _

// kernel: bert_re_forward.14
$region0: #{bert_re_forward.14}
  #allocation0 [shape = 'u32[]', space=smem, size = 0x4, offset = 0x4, fixed_abs, tag = 'smem constant byte address 0x4 - core index']
  #allocation1 [shape = 'u32[144,128]{1,0:T(1,128)}', space=vmem, size = 0x12000, scoped, tag = 'internal scratch']
  %s0 = inlined_call_operand.vmem [shape: bf16[16,32], index: 0, kind: input, shape index: {}]
  %s1 = inlined_call_operand.vmem [shape: bf16[32,16], index: 1, kind: input, shape index: {}]
  %s2 = inlined_call_operand.vmem [shape: bf16[16,32], index: 2, kind: input, shape index: {}]
  %s3 = inlined_call_operand.vmem [shape: bf16[16,32], index: 3, kind: output, shape index: {}]
  %s4 = sld [smem:[#allocation0]]
  $region22: #{bert_re_forward.14} parent=0
    _
  %s6 = ssub.s32 1, %s4
  %s7 = scalar_select 0, %s6, %s4
  // Predicated region
  $region2: #{bert_re_forward.14} parent=0 // pred_check
    _
  $region3: #{bert_re_forward.14} parent=0 // pred_check_branch
    %9 = sbr.rel (0) target = $region5
  $region4: #{bert_re_forward.14} parent=0 // pred_region
    _
  $region5: #{bert_re_forward.14} parent=0 // pred_fallthru
    _
  // Predicated region
  $region6: #{bert_re_forward.14} parent=0 // pred_check
    _
  $region7: #{bert_re_forward.14} parent=0 // pred_check_branch
    %11 = sbr.rel (0) target = $region9
  $region8: #{bert_re_forward.14} parent=0 // pred_region
    _
  $region9: #{bert_re_forward.14} parent=0 // pred_fallthru
    _
  // Predicated region
  $region10: #{bert_re_forward.14} parent=0 // pred_check
    _
  $region11: #{bert_re_forward.14} parent=0 // pred_check_branch
    %13 = sbr.rel (0) target = $region13
  $region12: #{bert_re_forward.14} parent=0 // pred_region
    _
  $region13: #{bert_re_forward.14} parent=0 // pred_fallthru
    _
  %v15 = vld [vmem:[%s0] sm:$0xf]
  %v16 = vld [vmem:[%s0 + $0x4] sm:$0xf]
  %v17 = vld [vmem:[%s1] sm:$0xf]
  %v18 = vld [vmem:[%s1 + $0x4] sm:$0xf]
  %v19 = vld [vmem:[%s1 + $0x8] sm:$0xf]
  %v20 = vld [vmem:[%s1 + $0xc] sm:$0xf]
  %v21 = vld [vmem:[%s2] sm:$0xf]
  %v22 = vld [vmem:[%s2 + $0x4] sm:$0xf]
  %v25 = vunpack.c.l.b16 %v15
  %v26 = vunpack.c.l.b16 %v16
  %v27 = vpack.c.b16 %v26, %v25
  %v30 = vunpack.c.l.b16 %v17
  %v31 = vunpack.c.l.b16 %v18
  %v32 = vpack.c.b16 %v31, %v30
  %vm34 = vcmask 130048
  %v36 = vsel %vm34, %v27, 0
  %38 = vmatprep.subr.bf16.mxu0 0
  %39 = vmatpush1.bf16.msra.mxu0 0
  %40 = vmatprep.subr.bf16.mxu0 0
  %41 = vmatpush1.bf16.msra.mxu0 0
  %42 = vmatprep.subr.bf16.mxu0 0
  %43 = vmatpush1.bf16.msra.mxu0 0
  %44 = vmatprep.subr.bf16.mxu0 0
  %45 = vmatpush1.bf16.msra.mxu0 0
  %46 = vmatprep.subr.bf16.mxu0 0
  %47 = vmatpush1.bf16.msra.mxu0 0
  %48 = vmatprep.subr.bf16.mxu0 0
  %49 = vmatpush1.bf16.msra.mxu0 0
  %50 = vmatprep.subr.bf16.mxu0 0
  %51 = vmatpush1.bf16.msra.mxu0 0
  %52 = vmatprep.subr.bf16.mxu0 0
  %53 = vmatpush1.bf16.msra.mxu0 %v32
  %54 = vmatprep.subr.bf16.mxu0 0
  %55 = vmatpush2.bf16.msra.mxu0 0
  %56 = vmatprep.subr.bf16.mxu0 0
  %57 = vmatpush2.bf16.msra.mxu0 0
  %58 = vmatprep.subr.bf16.mxu0 0
  %59 = vmatpush2.bf16.msra.mxu0 0
  %60 = vmatprep.subr.bf16.mxu0 0
  %61 = vmatpush2.bf16.msra.mxu0 0
  %62 = vmatprep.subr.bf16.mxu0 0
  %63 = vmatpush2.bf16.msra.mxu0 0
  %64 = vmatprep.subr.bf16.mxu0 0
  %65 = vmatpush2.bf16.msra.mxu0 0
  %66 = vmatprep.subr.bf16.mxu0 0
  %67 = vmatpush2.bf16.msra.mxu0 0
  %68 = vmatprep.subr.bf16.mxu0 0
  %69 = vmatpush2.bf16.msra.mxu0 0
  %70 = vmatprep.mubr.bf16.mxu0 0
  %71 = vmatmul.mubr.bf16.gmra.mxu0 %v36
  %v72 = vpop.f32.mrf.mxu0
  %v73 = vadd.f32 0.0, %v72
  %v74 = vpop.f32.mrf.mxu0
  %v75 = vpop.f32.mrf.mxu0
  %v76 = vadd.f32 0.0, %v75
  %v77 = vpop.f32.mrf.mxu0
  %78 = vdwg.mxu0
  %v79 = vsel %vm34, %v73, -inf
  %80 = vmax.xlane.f32.xlu0 %v79
  %v81 = vpop.xlane.xlu0 %80
  %v82 = vsel %vm34, %v76, -inf
  %83 = vmax.xlane.f32.xlu0 %v82
  %v84 = vpop.xlane.xlu0 %83
  %v85 = vsub.f32 %v73, %v81
  %v86 = vsub.f32 %v76, %v84
  %v87 = vmul.f32 %v85, 1.442695
  %v88 = vpow.pop %v87
  %v89 = vmul.f32 %v86, 1.442695
  %v90 = vpow.pop %v89
  %v91 = vsel %vm34, %v88, 0.0
  %92 = vadd.xlane.f32.xlu0 %v91
  %v93 = vpop.xlane.xlu0 %92
  %v94 = vsel %vm34, %v90, 0.0
  %95 = vadd.xlane.f32.xlu0 %v94
  %v96 = vpop.xlane.xlu0 %95
  %v97 = vpack.c.bf16 %v90, %v88
  %v100 = vunpack.c.l.b16 %v21
  %v101 = vunpack.c.l.b16 %v22
  %v102 = vpack.c.b16 %v101, %v100
  %v105 = vsel %vm34, %v97, 0
  %107 = vmatprep.subr.bf16.mxu0 0
  %108 = vmatpush1.bf16.msra.mxu0 0
  %109 = vmatprep.subr.bf16.mxu0 0
  %110 = vmatpush1.bf16.msra.mxu0 0
  %111 = vmatprep.subr.bf16.mxu0 0
  %112 = vmatpush1.bf16.msra.mxu0 0
  %113 = vmatprep.subr.bf16.mxu0 0
  %114 = vmatpush1.bf16.msra.mxu0 0
  %115 = vmatprep.subr.bf16.mxu0 0
  %116 = vmatpush1.bf16.msra.mxu0 0
  %117 = vmatprep.subr.bf16.mxu0 0
  %118 = vmatpush1.bf16.msra.mxu0 0
  %119 = vmatprep.subr.bf16.mxu0 0
  %120 = vmatpush1.bf16.msra.mxu0 0
  %121 = vmatprep.subr.bf16.mxu0 0
  %122 = vmatpush1.bf16.msra.mxu0 %v102
  %123 = vmatprep.subr.bf16.mxu0 0
  %124 = vmatpush2.bf16.msra.mxu0 0
  %125 = vmatprep.subr.bf16.mxu0 0
  %126 = vmatpush2.bf16.msra.mxu0 0
  %127 = vmatprep.subr.bf16.mxu0 0
  %128 = vmatpush2.bf16.msra.mxu0 0
  %129 = vmatprep.subr.bf16.mxu0 0
  %130 = vmatpush2.bf16.msra.mxu0 0
  %131 = vmatprep.subr.bf16.mxu0 0
  %132 = vmatpush2.bf16.msra.mxu0 0
  %133 = vmatprep.subr.bf16.mxu0 0
  %134 = vmatpush2.bf16.msra.mxu0 0
  %135 = vmatprep.subr.bf16.mxu0 0
  %136 = vmatpush2.bf16.msra.mxu0 0
  %137 = vmatprep.subr.bf16.mxu0 0
  %138 = vmatpush2.bf16.msra.mxu0 0
  %139 = vmatprep.mubr.bf16.mxu0 0
  %140 = vmatmul.mubr.bf16.gmra.mxu0 %v105
  %v141 = vpop.f32.mrf.mxu0
  %v142 = vadd.f32 0.0, %v141
  %v143 = vpop.f32.mrf.mxu0
  %v144 = vpop.f32.mrf.mxu0
  %v145 = vadd.f32 0.0, %v144
  %v146 = vpop.f32.mrf.mxu0
  %147 = vdwg.mxu0
  %v148 = vrcp.pop %v93
  %v149 = vrcp.pop %v96
  %v150 = vmul.f32 %v142, %v148
  %v151 = vmul.f32 %v145, %v149
  %152 = vrot.lane.b32.xlu0 %v27, 112
  %v153 = vpop.permute.xlu0 %152
  %v156 = vunpack.c.l.b16 %v19
  %v157 = vunpack.c.l.b16 %v20
  %v158 = vpack.c.b16 %v157, %v156
  %v161 = vsel %vm34, %v153, 0
  %163 = vmatprep.subr.bf16.mxu0 0
  %164 = vmatpush1.bf16.msra.mxu0 0
  %165 = vmatprep.subr.bf16.mxu0 0
  %166 = vmatpush1.bf16.msra.mxu0 0
  %167 = vmatprep.subr.bf16.mxu0 0
  %168 = vmatpush1.bf16.msra.mxu0 0
  %169 = vmatprep.subr.bf16.mxu0 0
  %170 = vmatpush1.bf16.msra.mxu0 0
  %171 = vmatprep.subr.bf16.mxu0 0
  %172 = vmatpush1.bf16.msra.mxu0 0
  %173 = vmatprep.subr.bf16.mxu0 0
  %174 = vmatpush1.bf16.msra.mxu0 0
  %175 = vmatprep.subr.bf16.mxu0 0
  %176 = vmatpush1.bf16.msra.mxu0 0
  %177 = vmatprep.subr.bf16.mxu0 0
  %178 = vmatpush1.bf16.msra.mxu0 %v158
  %179 = vmatprep.subr.bf16.mxu0 0
  %180 = vmatpush2.bf16.msra.mxu0 0
  %181 = vmatprep.subr.bf16.mxu0 0
  %182 = vmatpush2.bf16.msra.mxu0 0
  %183 = vmatprep.subr.bf16.mxu0 0
  %184 = vmatpush2.bf16.msra.mxu0 0
  %185 = vmatprep.subr.bf16.mxu0 0
  %186 = vmatpush2.bf16.msra.mxu0 0
  %187 = vmatprep.subr.bf16.mxu0 0
  %188 = vmatpush2.bf16.msra.mxu0 0
  %189 = vmatprep.subr.bf16.mxu0 0
  %190 = vmatpush2.bf16.msra.mxu0 0
  %191 = vmatprep.subr.bf16.mxu0 0
  %192 = vmatpush2.bf16.msra.mxu0 0
  %193 = vmatprep.subr.bf16.mxu0 0
  %194 = vmatpush2.bf16.msra.mxu0 0
  %195 = vmatprep.mubr.bf16.mxu0 0
  %196 = vmatmul.mubr.bf16.gmra.mxu0 %v161
  %v197 = vpop.f32.mrf.mxu0
  %v198 = vadd.f32 0.0, %v197
  %v199 = vpop.f32.mrf.mxu0
  %v200 = vpop.f32.mrf.mxu0
  %v201 = vadd.f32 0.0, %v200
  %v202 = vpop.f32.mrf.mxu0
  %203 = vdwg.mxu0
  %v204 = vsel %vm34, %v198, -inf
  %205 = vmax.xlane.f32.xlu0 %v204
  %v206 = vpop.xlane.xlu0 %205
  %v207 = vsel %vm34, %v201, -inf
  %208 = vmax.xlane.f32.xlu0 %v207
  %v209 = vpop.xlane.xlu0 %208
  %v210 = vsub.f32 %v198, %v206
  %v211 = vsub.f32 %v201, %v209
  %v212 = vmul.f32 %v210, 1.442695
  %v213 = vpow.pop %v212
  %v214 = vmul.f32 %v211, 1.442695
  %v215 = vpow.pop %v214
  %v216 = vsel %vm34, %v213, 0.0
  %217 = vadd.xlane.f32.xlu0 %v216
  %v218 = vpop.xlane.xlu0 %217
  %v219 = vsel %vm34, %v215, 0.0
  %220 = vadd.xlane.f32.xlu0 %v219
  %v221 = vpop.xlane.xlu0 %220
  %v222 = vpack.c.bf16 %v215, %v213
  %223 = vrot.lane.b32.xlu0 %v102, 112
  %v224 = vpop.permute.xlu0 %223
  %v227 = vsel %vm34, %v222, 0
  %229 = vmatprep.subr.bf16.mxu0 0
  %230 = vmatpush1.bf16.msra.mxu0 0
  %231 = vmatprep.subr.bf16.mxu0 0
  %232 = vmatpush1.bf16.msra.mxu0 0
  %233 = vmatprep.subr.bf16.mxu0 0
  %234 = vmatpush1.bf16.msra.mxu0 0
  %235 = vmatprep.subr.bf16.mxu0 0
  %236 = vmatpush1.bf16.msra.mxu0 0
  %237 = vmatprep.subr.bf16.mxu0 0
  %238 = vmatpush1.bf16.msra.mxu0 0
  %239 = vmatprep.subr.bf16.mxu0 0
  %240 = vmatpush1.bf16.msra.mxu0 0
  %241 = vmatprep.subr.bf16.mxu0 0
  %242 = vmatpush1.bf16.msra.mxu0 0
  %243 = vmatprep.subr.bf16.mxu0 0
  %244 = vmatpush1.bf16.msra.mxu0 %v224
  %245 = vmatprep.subr.bf16.mxu0 0
  %246 = vmatpush2.bf16.msra.mxu0 0
  %247 = vmatprep.subr.bf16.mxu0 0
  %248 = vmatpush2.bf16.msra.mxu0 0
  %249 = vmatprep.subr.bf16.mxu0 0
  %250 = vmatpush2.bf16.msra.mxu0 0
  %251 = vmatprep.subr.bf16.mxu0 0
  %252 = vmatpush2.bf16.msra.mxu0 0
  %253 = vmatprep.subr.bf16.mxu0 0
  %254 = vmatpush2.bf16.msra.mxu0 0
  %255 = vmatprep.subr.bf16.mxu0 0
  %256 = vmatpush2.bf16.msra.mxu0 0
  %257 = vmatprep.subr.bf16.mxu0 0
  %258 = vmatpush2.bf16.msra.mxu0 0
  %259 = vmatprep.subr.bf16.mxu0 0
  %260 = vmatpush2.bf16.msra.mxu0 0
  %261 = vmatprep.mubr.bf16.mxu0 0
  %262 = vmatmul.mubr.bf16.gmra.mxu0 %v227
  %v263 = vpop.f32.mrf.mxu0
  %v264 = vadd.f32 0.0, %v263
  %v265 = vpop.f32.mrf.mxu0
  %v266 = vpop.f32.mrf.mxu0
  %v267 = vadd.f32 0.0, %v266
  %v268 = vpop.f32.mrf.mxu0
  %269 = vdwg.mxu0
  %v270 = vrcp.pop %v218
  %v271 = vrcp.pop %v221
  %v272 = vmul.f32 %v264, %v270
  %v273 = vmul.f32 %v267, %v271
  %276 = vrot.lane.b32.xlu0 %v272, 16
  %v277 = vpop.permute.xlu0 %276
  %278 = vrot.lane.b32.xlu0 %v273, 16
  %v279 = vpop.permute.xlu0 %278
  %v282 = vsel %vm34, %v150, %v277
  %v283 = vsel %vm34, %v151, %v279
  %v284 = vpack.c.bf16 %v283, %v282
  %v286 = vunpack.c.l.b16 %v284
  %v287 = vunpack.c.h.b16 %v284
  %v288 = vpack.c.b16 %v286, %v286
  %v289 = vpack.c.b16 %v287, %v287
  %vm292 = vcmask 257024
  %293 = vst.msk [vmem:[%s3] sm:$0xf] %vm292, %v288
  %294 = vst.msk [vmem:[%s3 + $0x4] sm:$0xf] %vm292, %v289
  // Predicated region
  $region14: #{bert_re_forward.14} parent=0 // pred_check
    _
  $region15: #{bert_re_forward.14} parent=0 // pred_check_branch
    %296 = sbr.rel (0) target = $region17
  $region16: #{bert_re_forward.14} parent=0 // pred_region
    _
  $region17: #{bert_re_forward.14} parent=0 // pred_fallthru
    _
  // Predicated region
  $region18: #{bert_re_forward.14} parent=0 // pred_check
    _
  $region19: #{bert_re_forward.14} parent=0 // pred_check_branch
    %298 = sbr.rel (0) target = $region21
  $region20: #{bert_re_forward.14} parent=0 // pred_region
    _
  $region21: #{bert_re_forward.14} parent=0 // pred_fallthru
    _

// kernel: bert_re_forward.16
$region0: #{bert_re_forward.16}
  #allocation0 [shape = 'u32[]', space=smem, size = 0x4, offset = 0x4, fixed_abs, tag = 'smem constant byte address 0x4 - core index']
  #allocation1 [shape = 'u32[144,128]{1,0:T(1,128)}', space=vmem, size = 0x12000, scoped, tag = 'internal scratch']
  %s0 = inlined_call_operand.vmem [shape: bf16[16,32], index: 0, kind: input, shape index: {}]
  %s1 = inlined_call_operand.vmem [shape: bf16[32,64], index: 1, kind: input, shape index: {}]
  %s2 = inlined_call_operand.vmem [shape: f32[1,64], index: 2, kind: input, shape index: {}]
  %s3 = inlined_call_operand.vmem [shape: bf16[16,64], index: 3, kind: output, shape index: {}]
  %s4 = sld [smem:[#allocation0]]
  $region22: #{bert_re_forward.16} parent=0
    _
  %s6 = ssub.s32 1, %s4
  %s7 = scalar_select 0, %s6, %s4
  // Predicated region
  $region2: #{bert_re_forward.16} parent=0 // pred_check
    _
  $region3: #{bert_re_forward.16} parent=0 // pred_check_branch
    %9 = sbr.rel (0) target = $region5
  $region4: #{bert_re_forward.16} parent=0 // pred_region
    _
  $region5: #{bert_re_forward.16} parent=0 // pred_fallthru
    _
  // Predicated region
  $region6: #{bert_re_forward.16} parent=0 // pred_check
    _
  $region7: #{bert_re_forward.16} parent=0 // pred_check_branch
    %11 = sbr.rel (0) target = $region9
  $region8: #{bert_re_forward.16} parent=0 // pred_region
    _
  $region9: #{bert_re_forward.16} parent=0 // pred_fallthru
    _
  // Predicated region
  $region10: #{bert_re_forward.16} parent=0 // pred_check
    _
  $region11: #{bert_re_forward.16} parent=0 // pred_check_branch
    %13 = sbr.rel (0) target = $region13
  $region12: #{bert_re_forward.16} parent=0 // pred_region
    _
  $region13: #{bert_re_forward.16} parent=0 // pred_fallthru
    _
  %v15 = vld [vmem:[%s0] sm:$0xf]
  %v16 = vld [vmem:[%s0 + $0x4] sm:$0xf]
  %v17 = vld [vmem:[%s1] sm:$0xf]
  %v18 = vld [vmem:[%s1 + $0x4] sm:$0xf]
  %v19 = vld [vmem:[%s1 + $0x8] sm:$0xf]
  %v20 = vld [vmem:[%s1 + $0xc] sm:$0xf]
  %v21 = vld [vmem:[%s2] sm:$0x1]
  %v23 = vlaneseq
  %v24 = vshrl.u32 %v23, 7
  %v25 = vsub.s32 0, %v24
  %v26 = vrot.slane %v21, %v25
  %v30 = vunpack.c.l.b16 %v15
  %v31 = vunpack.c.l.b16 %v16
  %v32 = vpack.c.b16 %v31, %v30
  %v37 = vunpack.c.l.b16 %v17
  %v38 = vunpack.c.l.b16 %v18
  %v39 = vunpack.c.l.b16 %v19
  %v40 = vunpack.c.l.b16 %v20
  %v41 = vpack.c.b16 %v38, %v37
  %v42 = vpack.c.b16 %v40, %v39
  %vm45 = vcmask 261120
  %v47 = vsel %vm45, %v32, 0
  %49 = vmatprep.subr.bf16.mxu0 0
  %50 = vmatpush1.bf16.msra.mxu0 0
  %51 = vmatprep.subr.bf16.mxu0 0
  %52 = vmatpush1.bf16.msra.mxu0 0
  %53 = vmatprep.subr.bf16.mxu0 0
  %54 = vmatpush1.bf16.msra.mxu0 0
  %55 = vmatprep.subr.bf16.mxu0 0
  %56 = vmatpush1.bf16.msra.mxu0 0
  %57 = vmatprep.subr.bf16.mxu0 0
  %58 = vmatpush1.bf16.msra.mxu0 0
  %59 = vmatprep.subr.bf16.mxu0 0
  %60 = vmatpush1.bf16.msra.mxu0 0
  %61 = vmatprep.subr.bf16.mxu0 0
  %62 = vmatpush1.bf16.msra.mxu0 %v42
  %63 = vmatprep.subr.bf16.mxu0 0
  %64 = vmatpush1.bf16.msra.mxu0 %v41
  %65 = vmatprep.subr.bf16.mxu0 0
  %66 = vmatpush2.bf16.msra.mxu0 0
  %67 = vmatprep.subr.bf16.mxu0 0
  %68 = vmatpush2.bf16.msra.mxu0 0
  %69 = vmatprep.subr.bf16.mxu0 0
  %70 = vmatpush2.bf16.msra.mxu0 0
  %71 = vmatprep.subr.bf16.mxu0 0
  %72 = vmatpush2.bf16.msra.mxu0 0
  %73 = vmatprep.subr.bf16.mxu0 0
  %74 = vmatpush2.bf16.msra.mxu0 0
  %75 = vmatprep.subr.bf16.mxu0 0
  %76 = vmatpush2.bf16.msra.mxu0 0
  %77 = vmatprep.subr.bf16.mxu0 0
  %78 = vmatpush2.bf16.msra.mxu0 0
  %79 = vmatprep.subr.bf16.mxu0 0
  %80 = vmatpush2.bf16.msra.mxu0 0
  %81 = vmatprep.mubr.bf16.mxu0 0
  %82 = vmatmul.mubr.bf16.gmra.mxu0 %v47
  %v83 = vpop.f32.mrf.mxu0
  %v84 = vadd.f32 %v26, %v83
  %v85 = vpop.f32.mrf.mxu0
  %v86 = vpop.f32.mrf.mxu0
  %v87 = vadd.f32 %v26, %v86
  %v88 = vpop.f32.mrf.mxu0
  %89 = vdwg.mxu0
  %v90 = vmul.f32 %v84, %v84
  %v91 = vmul.f32 %v87, %v87
  %v92 = vmul.f32 %v84, %v90
  %v93 = vmul.f32 %v87, %v91
  %v94 = vmul.f32 %v92, 0.044715
  %v95 = vmul.f32 %v93, 0.044715
  %v96 = vadd.f32 %v84, %v94
  %v97 = vadd.f32 %v87, %v95
  %v98 = vmul.f32 %v96, 0.7978846
  %v99 = vmul.f32 %v97, 0.7978846
  %v100 = vtanh.pop %v98
  %v101 = vtanh.pop %v99
  %v102 = vadd.f32 %v100, 1.0
  %v103 = vadd.f32 %v101, 1.0
  %v104 = vmul.f32 %v102, 0.5
  %v105 = vmul.f32 %v103, 0.5
  %v106 = vmul.f32 %v84, %v104
  %v107 = vmul.f32 %v87, %v105
  %v108 = vpack.c.bf16 %v107, %v106
  %v110 = vunpack.c.l.b16 %v108
  %v111 = vunpack.c.h.b16 %v108
  %v112 = vpack.c.b16 %v110, %v110
  %v113 = vpack.c.b16 %v111, %v111
  %vm116 = vcmask 519168
  %117 = vst.msk [vmem:[%s3] sm:$0xf] %vm116, %v112
  %118 = vst.msk [vmem:[%s3 + $0x4] sm:$0xf] %vm116, %v113
  // Predicated region
  $region14: #{bert_re_forward.16} parent=0 // pred_check
    _
  $region15: #{bert_re_forward.16} parent=0 // pred_check_branch
    %120 = sbr.rel (0) target = $region17
  $region16: #{bert_re_forward.16} parent=0 // pred_region
    _
  $region17: #{bert_re_forward.16} parent=0 // pred_fallthru
    _
  // Predicated region
  $region18: #{bert_re_forward.16} parent=0 // pred_check
    _
  $region19: #{bert_re_forward.16} parent=0 // pred_check_branch
    %122 = sbr.rel (0) target = $region21
  $region20: #{bert_re_forward.16} parent=0 // pred_region
    _
  $region21: #{bert_re_forward.16} parent=0 // pred_fallthru
    _

// kernel: bert_re_forward.17
$region0: #{bert_re_forward.17}
  #allocation0 [shape = 'u32[]', space=smem, size = 0x4, offset = 0x4, fixed_abs, tag = 'smem constant byte address 0x4 - core index']
  #allocation1 [shape = 'u32[144,128]{1,0:T(1,128)}', space=vmem, size = 0x12000, scoped, tag = 'internal scratch']
  %s0 = inlined_call_operand.vmem [shape: bf16[16,64], index: 0, kind: input, shape index: {}]
  %s1 = inlined_call_operand.vmem [shape: bf16[64,32], index: 1, kind: input, shape index: {}]
  %s2 = inlined_call_operand.vmem [shape: f32[1,32], index: 2, kind: input, shape index: {}]
  %s3 = inlined_call_operand.vmem [shape: bf16[16,32], index: 3, kind: input, shape index: {}]
  %s4 = inlined_call_operand.vmem [shape: f32[1,32], index: 4, kind: input, shape index: {}]
  %s5 = inlined_call_operand.vmem [shape: f32[1,32], index: 5, kind: input, shape index: {}]
  %s6 = inlined_call_operand.vmem [shape: bf16[16,32], index: 6, kind: output, shape index: {}]
  %s7 = sld [smem:[#allocation0]]
  $region34: #{bert_re_forward.17} parent=0
    _
  %s9 = ssub.s32 1, %s7
  %s10 = scalar_select 0, %s9, %s7
  // Predicated region
  $region2: #{bert_re_forward.17} parent=0 // pred_check
    _
  $region3: #{bert_re_forward.17} parent=0 // pred_check_branch
    %12 = sbr.rel (0) target = $region5
  $region4: #{bert_re_forward.17} parent=0 // pred_region
    _
  $region5: #{bert_re_forward.17} parent=0 // pred_fallthru
    _
  // Predicated region
  $region6: #{bert_re_forward.17} parent=0 // pred_check
    _
  $region7: #{bert_re_forward.17} parent=0 // pred_check_branch
    %14 = sbr.rel (0) target = $region9
  $region8: #{bert_re_forward.17} parent=0 // pred_region
    _
  $region9: #{bert_re_forward.17} parent=0 // pred_fallthru
    _
  // Predicated region
  $region10: #{bert_re_forward.17} parent=0 // pred_check
    _
  $region11: #{bert_re_forward.17} parent=0 // pred_check_branch
    %16 = sbr.rel (0) target = $region13
  $region12: #{bert_re_forward.17} parent=0 // pred_region
    _
  $region13: #{bert_re_forward.17} parent=0 // pred_fallthru
    _
  // Predicated region
  $region14: #{bert_re_forward.17} parent=0 // pred_check
    _
  $region15: #{bert_re_forward.17} parent=0 // pred_check_branch
    %18 = sbr.rel (0) target = $region17
  $region16: #{bert_re_forward.17} parent=0 // pred_region
    _
  $region17: #{bert_re_forward.17} parent=0 // pred_fallthru
    _
  // Predicated region
  $region18: #{bert_re_forward.17} parent=0 // pred_check
    _
  $region19: #{bert_re_forward.17} parent=0 // pred_check_branch
    %20 = sbr.rel (0) target = $region21
  $region20: #{bert_re_forward.17} parent=0 // pred_region
    _
  $region21: #{bert_re_forward.17} parent=0 // pred_fallthru
    _
  // Predicated region
  $region22: #{bert_re_forward.17} parent=0 // pred_check
    _
  $region23: #{bert_re_forward.17} parent=0 // pred_check_branch
    %22 = sbr.rel (0) target = $region25
  $region24: #{bert_re_forward.17} parent=0 // pred_region
    _
  $region25: #{bert_re_forward.17} parent=0 // pred_fallthru
    _
  %v24 = vld [vmem:[%s0] sm:$0xf]
  %v25 = vld [vmem:[%s0 + $0x4] sm:$0xf]
  %v26 = vld [vmem:[%s1] sm:$0xf]
  %v27 = vld [vmem:[%s1 + $0x4] sm:$0xf]
  %v28 = vld [vmem:[%s1 + $0x8] sm:$0xf]
  %v29 = vld [vmem:[%s1 + $0xc] sm:$0xf]
  %v30 = vld [vmem:[%s1 + $0x10] sm:$0xf]
  %v31 = vld [vmem:[%s1 + $0x14] sm:$0xf]
  %v32 = vld [vmem:[%s1 + $0x18] sm:$0xf]
  %v33 = vld [vmem:[%s1 + $0x1c] sm:$0xf]
  %v34 = vld [vmem:[%s2] sm:$0x1]
  %v36 = vlaneseq
  %v37 = vshrl.u32 %v36, 7
  %v38 = vsub.s32 0, %v37
  %v39 = vrot.slane %v34, %v38
  %v43 = vunpack.c.l.b16 %v24
  %v44 = vunpack.c.l.b16 %v25
  %v45 = vpack.c.b16 %v44, %v43
  %v54 = vunpack.c.l.b16 %v26
  %v55 = vunpack.c.l.b16 %v27
  %v56 = vunpack.c.l.b16 %v28
  %v57 = vunpack.c.l.b16 %v29
  %v58 = vunpack.c.l.b16 %v30
  %v59 = vunpack.c.l.b16 %v31
  %v60 = vunpack.c.l.b16 %v32
  %v61 = vunpack.c.l.b16 %v33
  %v62 = vpack.c.b16 %v55, %v54
  %v63 = vpack.c.b16 %v57, %v56
  %v64 = vpack.c.b16 %v59, %v58
  %v65 = vpack.c.b16 %v61, %v60
  %vm70 = vcmask 523264
  %v72 = vsel %vm70, %v45, 0
  %74 = vmatprep.subr.bf16.mxu0 0
  %75 = vmatpush1.bf16.msra.mxu0 0
  %76 = vmatprep.subr.bf16.mxu0 0
  %77 = vmatpush1.bf16.msra.mxu0 0
  %78 = vmatprep.subr.bf16.mxu0 0
  %79 = vmatpush1.bf16.msra.mxu0 0
  %80 = vmatprep.subr.bf16.mxu0 0
  %81 = vmatpush1.bf16.msra.mxu0 0
  %82 = vmatprep.subr.bf16.mxu0 0
  %83 = vmatpush1.bf16.msra.mxu0 %v65
  %84 = vmatprep.subr.bf16.mxu0 0
  %85 = vmatpush1.bf16.msra.mxu0 %v64
  %86 = vmatprep.subr.bf16.mxu0 0
  %87 = vmatpush1.bf16.msra.mxu0 %v63
  %88 = vmatprep.subr.bf16.mxu0 0
  %89 = vmatpush1.bf16.msra.mxu0 %v62
  %90 = vmatprep.subr.bf16.mxu0 0
  %91 = vmatpush2.bf16.msra.mxu0 0
  %92 = vmatprep.subr.bf16.mxu0 0
  %93 = vmatpush2.bf16.msra.mxu0 0
  %94 = vmatprep.subr.bf16.mxu0 0
  %95 = vmatpush2.bf16.msra.mxu0 0
  %96 = vmatprep.subr.bf16.mxu0 0
  %97 = vmatpush2.bf16.msra.mxu0 0
  %98 = vmatprep.subr.bf16.mxu0 0
  %99 = vmatpush2.bf16.msra.mxu0 0
  %100 = vmatprep.subr.bf16.mxu0 0
  %101 = vmatpush2.bf16.msra.mxu0 0
  %102 = vmatprep.subr.bf16.mxu0 0
  %103 = vmatpush2.bf16.msra.mxu0 0
  %104 = vmatprep.subr.bf16.mxu0 0
  %105 = vmatpush2.bf16.msra.mxu0 0
  %106 = vmatprep.mubr.bf16.mxu0 0
  %107 = vmatmul.mubr.bf16.gmra.mxu0 %v72
  %v108 = vpop.f32.mrf.mxu0
  %v109 = vadd.f32 %v39, %v108
  %v110 = vpop.f32.mrf.mxu0
  %v111 = vpop.f32.mrf.mxu0
  %v112 = vadd.f32 %v39, %v111
  %v113 = vpop.f32.mrf.mxu0
  %114 = vdwg.mxu0
  %v115 = vld [vmem:[%s3] sm:$0xf]
  %v116 = vld [vmem:[%s3 + $0x4] sm:$0xf]
  %v117 = vunpack.c.l.bf16 %v115
  %v118 = vunpack.c.l.bf16 %v116
  %v119 = vadd.f32 %v109, %v117
  %v120 = vadd.f32 %v112, %v118
  %vm121 = vcmask 261120
  %v122 = vsel %vm121, %v119, 0.0
  %123 = vadd.xlane.f32.xlu0 %v122
  %v124 = vpop.xlane.xlu0 %123
  %v125 = vsel %vm121, %v120, 0.0
  %126 = vadd.xlane.f32.xlu0 %v125
  %v127 = vpop.xlane.xlu0 %126
  %v128 = vrcp.pop 32.0
  %v129 = vmul.f32 %v124, %v128
  %v130 = vmul.f32 %v127, %v128
  %v131 = vsub.f32 %v119, %v129
  %v132 = vsub.f32 %v120, %v130
  %v133 = vmul.f32 %v131, %v131
  %v134 = vmul.f32 %v132, %v132
  %v135 = vsel %vm121, %v133, 0.0
  %136 = vadd.xlane.f32.xlu0 %v135
  %v137 = vpop.xlane.xlu0 %136
  %v138 = vsel %vm121, %v134, 0.0
  %139 = vadd.xlane.f32.xlu0 %v138
  %v140 = vpop.xlane.xlu0 %139
  %v141 = vmul.f32 %v137, %v128
  %v142 = vmul.f32 %v140, %v128
  %v143 = vadd.f32 %v141, 1e-12
  %v144 = vadd.f32 %v142, 1e-12
  %v145 = vrsqrt.pop %v143
  %v146 = vrsqrt.pop %v144
  %v147 = vmul.f32 %v131, %v145
  %v148 = vmul.f32 %v132, %v146
  %v149 = vld [vmem:[%s4] sm:$0x1]
  %v151 = vlaneseq
  %v152 = vshrl.u32 %v151, 7
  %v153 = vsub.s32 0, %v152
  %v154 = vrot.slane %v149, %v153
  %v156 = vmul.f32 %v147, %v154
  %v157 = vmul.f32 %v148, %v154
  %v158 = vld [vmem:[%s5] sm:$0x1]
  %v160 = vlaneseq
  %v161 = vshrl.u32 %v160, 7
  %v162 = vsub.s32 0, %v161
  %v163 = vrot.slane %v158, %v162
  %v165 = vadd.f32 %v156, %v163
  %v166 = vadd.f32 %v157, %v163
  %v167 = vpack.c.bf16 %v166, %v165
  %v169 = vunpack.c.l.b16 %v167
  %v170 = vunpack.c.h.b16 %v167
  %v171 = vpack.c.b16 %v169, %v169
  %v172 = vpack.c.b16 %v170, %v170
  %vm175 = vcmask 257024
  %176 = vst.msk [vmem:[%s6] sm:$0xf] %vm175, %v171
  %177 = vst.msk [vmem:[%s6 + $0x4] sm:$0xf] %vm175, %v172
  // Predicated region
  $region26: #{bert_re_forward.17} parent=0 // pred_check
    _
  $region27: #{bert_re_forward.17} parent=0 // pred_check_branch
    %179 = sbr.rel (0) target = $region29
  $region28: #{bert_re_forward.17} parent=0 // pred_region
    _
  $region29: #{bert_re_forward.17} parent=0 // pred_fallthru
    _
  // Predicated region
  $region30: #{bert_re_forward.17} parent=0 // pred_check
    _
  $region31: #{bert_re_forward.17} parent=0 // pred_check_branch
    %181 = sbr.rel (0) target = $region33
  $region32: #{bert_re_forward.17} parent=0 // pred_region
    _
  $region33: #{bert_re_forward.17} parent=0 // pred_fallthru
    _

// kernel: bert_re_forward.23
$region0: #{bert_re_forward.23}
  #allocation0 [shape = 'u32[]', space=smem, size = 0x4, offset = 0x4, fixed_abs, tag = 'smem constant byte address 0x4 - core index']
  #allocation1 [shape = 'u32[144,128]{1,0:T(1,128)}', space=vmem, size = 0x12000, scoped, tag = 'internal scratch']
  %s0 = inlined_call_operand.vmem [shape: bf16[3,64], index: 0, kind: input, shape index: {}]
  %s1 = inlined_call_operand.vmem [shape: bf16[64,4], index: 1, kind: input, shape index: {}]
  %s2 = inlined_call_operand.vmem [shape: f32[1,4], index: 2, kind: input, shape index: {}]
  %s3 = inlined_call_operand.vmem [shape: s32[3,1], index: 3, kind: input, shape index: {}]
  %s4 = inlined_call_operand.hbm [shape: f32[3,4], index: 4, kind: output, shape index: {0}]
  %s5 = inlined_call_operand.hbm [shape: f32[1,1], index: 5, kind: output, shape index: {1}]
  %6 = xla_tuple %s4, %s5
  %s7 = sld [smem:[#allocation0]]
  $region34: #{bert_re_forward.23} parent=0
    _
  %s9 = ssub.s32 1, %s7
  %s10 = scalar_select 0, %s9, %s7
  $region1: #{bert_re_forward.23} parent=0
    #allocation2 [shape = 'u8[2048]{0}', space=vmem, size = 0x800, scoped, tag = 'output window, operand 0, single buffered']
    #allocation3 [shape = 's32[1]{0}', space=sflag, size = 0x4, scoped, tag = 'scoped memory for bert_re_forward.23']
    #allocation4 [shape = 's32[1]{0}', space=sflag, size = 0x4, scoped, tag = 'scoped memory for bert_re_forward.23']
    #allocation5 [shape = 'u8[512]{0}', space=smem, size = 0x200, scoped, tag = 'output window, operand 1, single buffered']
    %11 = vsyncpa [#allocation3], 0
    %12 = vsyncpa [#allocation4], 0
    // Predicated region
    $region2: #{bert_re_forward.23} parent=1 // pred_check
      _
    $region3: #{bert_re_forward.23} parent=1 // pred_check_branch
      %14 = sbr.rel (0) target = $region5
    $region4: #{bert_re_forward.23} parent=1 // pred_region
      _
    $region5: #{bert_re_forward.23} parent=1 // pred_fallthru
      _
    // Predicated region
    $region6: #{bert_re_forward.23} parent=1 // pred_check
      _
    $region7: #{bert_re_forward.23} parent=1 // pred_check_branch
      %16 = sbr.rel (0) target = $region9
    $region8: #{bert_re_forward.23} parent=1 // pred_region
      _
    $region9: #{bert_re_forward.23} parent=1 // pred_fallthru
      _
    // Predicated region
    $region10: #{bert_re_forward.23} parent=1 // pred_check
      _
    $region11: #{bert_re_forward.23} parent=1 // pred_check_branch
      %18 = sbr.rel (0) target = $region13
    $region12: #{bert_re_forward.23} parent=1 // pred_region
      _
    $region13: #{bert_re_forward.23} parent=1 // pred_fallthru
      _
    // Predicated region
    $region14: #{bert_re_forward.23} parent=1 // pred_check
      _
    $region15: #{bert_re_forward.23} parent=1 // pred_check_branch
      %20 = sbr.rel (0) target = $region17
    $region16: #{bert_re_forward.23} parent=1 // pred_region
      _
    $region17: #{bert_re_forward.23} parent=1 // pred_fallthru
      _
    %v22 = vld [vmem:[%s0] sm:$0x3]
    %v23 = vld [vmem:[%s1] sm:$0xf]
    %v24 = vld [vmem:[%s1 + $0x4] sm:$0xf]
    %v25 = vld [vmem:[%s1 + $0x8] sm:$0xf]
    %v26 = vld [vmem:[%s1 + $0xc] sm:$0xf]
    %v27 = vld [vmem:[%s1 + $0x10] sm:$0xf]
    %v28 = vld [vmem:[%s1 + $0x14] sm:$0xf]
    %v29 = vld [vmem:[%s1 + $0x18] sm:$0xf]
    %v30 = vld [vmem:[%s1 + $0x1c] sm:$0xf]
    %v31 = vld [vmem:[%s2] sm:$0x1]
    %v33 = vlaneseq
    %v34 = vshrl.u32 %v33, 7
    %v35 = vsub.s32 0, %v34
    %v36 = vrot.slane %v31, %v35
    %v46 = vunpack.c.l.b16 %v23
    %v47 = vunpack.c.l.b16 %v24
    %v48 = vunpack.c.l.b16 %v25
    %v49 = vunpack.c.l.b16 %v26
    %v50 = vunpack.c.l.b16 %v27
    %v51 = vunpack.c.l.b16 %v28
    %v52 = vunpack.c.l.b16 %v29
    %v53 = vunpack.c.l.b16 %v30
    %v54 = vpack.c.b16 %v47, %v46
    %v55 = vpack.c.b16 %v49, %v48
    %v56 = vpack.c.b16 %v51, %v50
    %v57 = vpack.c.b16 %v53, %v52
    %vm62 = vcmask 523264
    %v64 = vsel %vm62, %v22, 0
    %66 = vmatprep.subr.bf16.mxu0 0
    %67 = vmatpush1.bf16.msra.mxu0 0
    %68 = vmatprep.subr.bf16.mxu0 0
    %69 = vmatpush1.bf16.msra.mxu0 0
    %70 = vmatprep.subr.bf16.mxu0 0
    %71 = vmatpush1.bf16.msra.mxu0 0
    %72 = vmatprep.subr.bf16.mxu0 0
    %73 = vmatpush1.bf16.msra.mxu0 0
    %74 = vmatprep.subr.bf16.mxu0 0
    %75 = vmatpush1.bf16.msra.mxu0 %v57
    %76 = vmatprep.subr.bf16.mxu0 0
    %77 = vmatpush1.bf16.msra.mxu0 %v56
    %78 = vmatprep.subr.bf16.mxu0 0
    %79 = vmatpush1.bf16.msra.mxu0 %v55
    %80 = vmatprep.subr.bf16.mxu0 0
    %81 = vmatpush1.bf16.msra.mxu0 %v54
    %82 = vmatprep.subr.bf16.mxu0 0
    %83 = vmatpush2.bf16.msra.mxu0 0
    %84 = vmatprep.subr.bf16.mxu0 0
    %85 = vmatpush2.bf16.msra.mxu0 0
    %86 = vmatprep.subr.bf16.mxu0 0
    %87 = vmatpush2.bf16.msra.mxu0 0
    %88 = vmatprep.subr.bf16.mxu0 0
    %89 = vmatpush2.bf16.msra.mxu0 0
    %90 = vmatprep.subr.bf16.mxu0 0
    %91 = vmatpush2.bf16.msra.mxu0 0
    %92 = vmatprep.subr.bf16.mxu0 0
    %93 = vmatpush2.bf16.msra.mxu0 0
    %94 = vmatprep.subr.bf16.mxu0 0
    %95 = vmatpush2.bf16.msra.mxu0 0
    %96 = vmatprep.subr.bf16.mxu0 0
    %97 = vmatpush2.bf16.msra.mxu0 0
    %98 = vmatprep.mubr.bf16.mxu0 0
    %99 = vmatmul.mubr.bf16.gmra.mxu0 %v64
    %v100 = vpop.f32.mrf.mxu0
    %v101 = vadd.f32 %v36, %v100
    %v102 = vpop.f32.mrf.mxu0
    %v103 = vpop.f32.mrf.mxu0
    %v104 = vpop.f32.mrf.mxu0
    %105 = vdwg.mxu0
    %vm106 = vcmask 26624
    %107 = vst.msk [vmem:[#allocation2] sm:$0x7] %vm106, %v101
    %v108 = vld [vmem:[%s3] sm:$0x7]
    %v109 = vsel %vm106, %v101, -inf
    %110 = vmax.xlane.f32.xlu0 %v109
    %v111 = vpop.xlane.xlu0 %110
    %v112 = vsub.f32 %v101, %v111
    %v113 = vmul.f32 %v112, 1.442695
    %v114 = vpow.pop %v113
    %v115 = vsel %vm106, %v114, 0.0
    %116 = vadd.xlane.f32.xlu0 %v115
    %v117 = vpop.xlane.xlu0 %116
    %v118 = vlog2.pop %v117
    %v119 = vmul.f32 %v118, 0.6931472
    %v120 = vsub.f32 %v112, %v119
    %v121 = vlaneseq
    %v122 = vand.u32 %v121, 127
    %123 = vset.pattern.permute.xlu0 0
    %124 = vperm.xlu0 %123, %v108
    %v125 = vpop.permute.xlu0 %124
    %vm126 = vcmp.eq.s32.totalorder %v122, %v125
    %v127 = vsel %vm126, 1, 0
    %v128 = vcvt.s32.f32 %v127
    %v129 = vmul.f32 %v128, %v120
    %v130 = vsel %vm106, %v129, 0.0
    %131 = vadd.xlane.f32.xlu0 %v130
    %v132 = vpop.xlane.xlu0 %131
    %v133 = vsub.f32 0.0, %v132
    %vm134 = vcmp.ne.s32.totalorder %v108, 4294967295
    %v135 = vsel %vm134, 1, 0
    %v136 = vcvt.s32.f32 %v135
    %v137 = vmul.f32 %v133, %v136
    %vm138 = vcmask 2048
    %v139 = vsel %vm138, %v137, 0.0
    %140 = vadd.xlane.f32.xlu0 %v139
    %v141 = vpop.xlane.xlu0 %140
    %v142 = vrot.slane %v141, 4
    %v143 = vadd.f32 %v141, %v142
    %v144 = vrot.slane %v143, 2
    %v145 = vadd.f32 %v143, %v144
    %v146 = vrot.slane %v145, 1
    %v147 = vadd.f32 %v145, %v146
    %s148 = vtos %v147
    %v149 = vsel %vm138, %v136, 0.0
    %150 = vadd.xlane.f32.xlu0 %v149
    %v151 = vpop.xlane.xlu0 %150
    %v152 = vrot.slane %v151, 4
    %v153 = vadd.f32 %v151, %v152
    %v154 = vrot.slane %v153, 2
    %v155 = vadd.f32 %v153, %v154
    %v156 = vrot.slane %v155, 1
    %v157 = vadd.f32 %v155, %v156
    %s158 = vtos %v157
    %v159 = vstv %s158
    %v160 = vrcp.pop %v159
    %s161 = vtos %v160
    %s162 = smul.f32 %s148, %s161
    %s163 = scalar_lea.smem [#allocation5], 0
    %164 = sst [smem:[%s163]] %s162
    // Predicated region
    $region18: #{bert_re_forward.23} parent=1 // pred_check
      _
    $region19: #{bert_re_forward.23} parent=1 // pred_check_branch
      %166 = sbr.rel (0) target = $region21
    $region20: #{bert_re_forward.23} parent=1 // pred_region
      %s168 = ssub.s32 64, 64
      %169 = vsyncadd [#allocation3], %s168
      %s171 = sshll.u32 [#allocation2], 4
      %s172 = int_to_ptr.vmem [resolvable:$true] %s171
      %174 = dma.vmem_to_hbm [thread:$0]  %s172, 64, %s4, [#allocation3]
    $region21: #{bert_re_forward.23} parent=1 // pred_fallthru
      _
    // Predicated region
    $region22: #{bert_re_forward.23} parent=1 // pred_check
      _
    $region23: #{bert_re_forward.23} parent=1 // pred_check_branch
      %176 = sbr.rel (0) target = $region25
    $region24: #{bert_re_forward.23} parent=1 // pred_region
      %s178 = ssub.s32 16, 16
      %179 = vsyncadd [#allocation4], %s178
      %182 = dma.smem_to_hbm [#allocation5], 16, %s5, [#allocation4]
    $region25: #{bert_re_forward.23} parent=1 // pred_fallthru
      _
    // Predicated region
    $region26: #{bert_re_forward.23} parent=1 // pred_check
      _
    $region27: #{bert_re_forward.23} parent=1 // pred_check_branch
      %184 = sbr.rel (0) target = $region29
    $region28: #{bert_re_forward.23} parent=1 // pred_region
      %185 = dma.done [#allocation3], 64
    $region29: #{bert_re_forward.23} parent=1 // pred_fallthru
      _
    // Predicated region
    $region30: #{bert_re_forward.23} parent=1 // pred_check
      _
    $region31: #{bert_re_forward.23} parent=1 // pred_check_branch
      %187 = sbr.rel (0) target = $region33
    $region32: #{bert_re_forward.23} parent=1 // pred_region
      %188 = dma.done [#allocation4], 16
    $region33: #{bert_re_forward.23} parent=1 // pred_fallthru
      _
    %189 = sfence
    %190 = vsyncpa [#allocation3], 1
    %191 = vsyncpa [#allocation4], 1

</llo_original>
